<compile_context>
chip_gen: v5e
topology: v5e:2x2
jax: 0.10.0
libtpu: 0.0.40
codegen_flags: <defaults>
</compile_context>

<pallas_src>
import functools

import jax
import jax.numpy as jnp
from jax.experimental import pallas as pl
from jax.experimental.pallas import tpu as pltpu


def wavenet_kernel(dilations, C, T, gate_dtype, matmul_dtype,
                   x_ref, w_in_ref, b_in_ref,
                   w_h0_ref, w_h1_ref, b_h_ref,
                   w_r_ref, b_r_ref,
                   w_m_ref, b_m_ref,
                   out_ref):
    """One batch-block per grid step.  Channels live on sublanes, batch*time on lanes."""
    BT = x_ref.shape[1]
    gdt = gate_dtype
    mdt = matmul_dtype

    # input_layer: 1x1 conv 1 -> C channels == outer product on the VPU.
    x = x_ref[...]                                              # (1, BT)  f32
    cur = w_in_ref[...] * x + b_in_ref[...]                     # (C, BT)  f32

    # Time index within each batch element (batch folded onto lanes).  Masks are hoisted
    # and computed once per UNIQUE dilation; they also stop the lane roll from leaking
    # across batch boundaries in the flattened layout.
    t_idx = jax.lax.broadcasted_iota(jnp.int32, (C, BT), 1) % T
    masks = {d: t_idx >= d for d in sorted(set(dilations)) if d < T}

    mix = jnp.zeros((C, BT), jnp.float32)                       # mixer accumulator

    for l, d in enumerate(dilations):
        xl = cur                                                # residual input, f32
        if d < T:
            # causal dilated shift: shifted[:, t] = xl[:, t - d], zero for t < d.
            shifted = jnp.where(masks[d], pltpu.roll(xl, shift=d, axis=1), 0.0)
        else:
            shifted = jnp.zeros_like(xl)

        # Hidden conv (kernel_size=2, dilation=d): two small MXU pushes, f32 accumulate.
        # Rows [:C] of h feed tanh, rows [C:] feed sigmoid (PyTorch split order).
        h = (jnp.dot(w_h0_ref[l], shifted.astype(mdt),
                     preferred_element_type=jnp.float32)
             + jnp.dot(w_h1_ref[l], xl.astype(mdt),
                       preferred_element_type=jnp.float32)
             + b_h_ref[l])                                      # (2C, BT) f32

        # Gate: sigmoid(x) == 0.5*tanh(0.5*x) + 0.5  (2 EUP ops/element).
        th = jnp.tanh(h[:C].astype(gdt))
        sg = 0.5 * jnp.tanh(0.5 * h[C:].astype(gdt)) + 0.5
        gated = th * sg                                         # (C, BT) gdt

        # residual 1x1 conv written straight into cur.
        cur = (xl
               + jnp.dot(w_r_ref[l], gated.astype(mdt),
                         preferred_element_type=jnp.float32)
               + b_r_ref[l])                                    # (C, BT) f32

        # linear_mixer folded into the loop as a lane-wise accumulate.
        mix = mix + gated.astype(jnp.float32) * w_m_ref[l]

    # single SUBLANE reduce + bias -> lane-dense (1, Mblk) output slab.
    out_ref[...] = jnp.sum(mix, axis=0, keepdims=True) + b_m_ref[...]


def select_gate_dtype():
    """bf16 gate math on v6e / v7x (bf16 VPU/EUP); f32 elsewhere (e.g. v5e)."""
    kind = jax.devices()[0].device_kind.lower()
    if any(tag in kind for tag in ("v6", "v7", "tpu7")):
        return jnp.bfloat16
    return jnp.float32


def _pick_batch_block(B, T):
    """Largest batch block giving >=2 grid steps (v7x has 2 TCs) with lane blocks that
    are multiples of 128; fall back to a single full-array block."""
    for bb in range(B // 2, 0, -1):
        if B % bb == 0 and (bb * T) % 128 == 0:
            return bb
    return B


def wavenet_forward(x_ncw, params, dilations, num_channels,
                    gate_dtype=None, matmul_dtype=None, batch_block=None):
    B, _, T = x_ncw.shape
    C = num_channels
    L = len(dilations)
    if gate_dtype is None:
        gate_dtype = select_gate_dtype()
    if matmul_dtype is None:
        matmul_dtype = jnp.bfloat16          # MXU is native bf16 on v5e/v6e/v7x
    if batch_block is None:
        batch_block = _pick_batch_block(B, T)
    Mblk = batch_block * T

    # (B, 1, T) -> (1, B*T): batch*time on LANES (channel dim is 1, so a plain reshape
    # keeps batch-major time order).
    x_flat = x_ncw.astype(jnp.float32).reshape(1, B * T)

    # Cast matmul weights once in the wrapper (biases / mixer stay f32).
    w_h0 = params['w_h_t0'].astype(matmul_dtype)
    w_h1 = params['w_h_t1'].astype(matmul_dtype)
    w_r = params['w_r'].astype(matmul_dtype)

    kernel = functools.partial(wavenet_kernel, tuple(dilations), C, T,
                               gate_dtype, matmul_dtype)

    out = pl.pallas_call(
        kernel,
        out_shape=jax.ShapeDtypeStruct((1, B * T), jnp.float32),
        grid_spec=pltpu.PrefetchScalarGridSpec(
            num_scalar_prefetch=0,
            grid=(B // batch_block,),
            in_specs=[
                pl.BlockSpec((1, Mblk), lambda i: (0, i)),          # x (lane-dense)
                pl.BlockSpec((C, 1), lambda i: (0, 0)),             # w_in
                pl.BlockSpec((C, 1), lambda i: (0, 0)),             # b_in
                pl.BlockSpec((L, 2 * C, C), lambda i: (0, 0, 0)),   # w_h tap0 (out,in)
                pl.BlockSpec((L, 2 * C, C), lambda i: (0, 0, 0)),   # w_h tap1 (out,in)
                pl.BlockSpec((L, 2 * C, 1), lambda i: (0, 0, 0)),   # b_h
                pl.BlockSpec((L, C, C), lambda i: (0, 0, 0)),       # w_r (out,in)
                pl.BlockSpec((L, C, 1), lambda i: (0, 0, 0)),       # b_r
                pl.BlockSpec((L, C, 1), lambda i: (0, 0, 0)),       # w_m
                pl.BlockSpec((1, 1), lambda i: (0, 0)),             # b_m
            ],
            out_specs=pl.BlockSpec((1, Mblk), lambda i: (0, i)),    # lane-dense output
        ),
        compiler_params=pltpu.CompilerParams(
            dimension_semantics=("parallel",),
            vmem_limit_bytes=48 * 1024 * 1024),
    )(x_flat, params['w_in'], params['b_in'],
      w_h0, w_h1, params['b_h'],
      w_r, params['b_r'],
      params['w_m'], params['b_m'])

    return out.reshape(B, 1, T)      # back to PyTorch NCW


def init_params(key, C, dilation_depth, dilation_repeat, kernel_size=2):
    """Deterministic synthetic parameters with the same shapes as the PyTorch module,
    packed into the kernel-friendly (out x in, channels-leading) layout."""
    L = dilation_depth * dilation_repeat
    ks = jax.random.split(key, 8)
    # PyTorch Conv1d layouts: weight (out_ch, in_ch, kernel).
    w_in_pt = jax.random.normal(ks[0], (C, 1, 1), jnp.float32) * 0.3       # Conv1d(1, C, 1)
    b_in_pt = jax.random.normal(ks[1], (C,), jnp.float32) * 0.1
    w_h_pt = jax.random.normal(ks[2], (L, 2 * C, C, kernel_size), jnp.float32) * 0.3
    b_h_pt = jax.random.normal(ks[3], (L, 2 * C), jnp.float32) * 0.1
    w_r_pt = jax.random.normal(ks[4], (L, C, C, 1), jnp.float32) * 0.3
    b_r_pt = jax.random.normal(ks[5], (L, C), jnp.float32) * 0.1
    w_m_pt = jax.random.normal(ks[6], (1, L * C, 1), jnp.float32) * 0.3    # linear_mixer
    b_m_pt = jax.random.normal(ks[7], (1,), jnp.float32) * 0.1

    return {
        'w_in': w_in_pt[:, 0, 0][:, None],                     # (C, 1)
        'b_in': b_in_pt[:, None],                              # (C, 1)
        'w_h_t0': w_h_pt[:, :, :, 0],                          # (L, 2C, C): tap on x[t-d]
        'w_h_t1': w_h_pt[:, :, :, 1],                          # (L, 2C, C): tap on x[t]
        'b_h': b_h_pt[:, :, None],                             # (L, 2C, 1)
        'w_r': w_r_pt[:, :, :, 0],                             # (L, C, C)
        'b_r': b_r_pt[:, :, None],                             # (L, C, 1)
        'w_m': w_m_pt[0, :, 0].reshape(L, C)[:, :, None],      # (L, C, 1)
        'b_m': b_m_pt[None, :],                                # (1, 1)
    }


def wavenet_ref(x_ncw, params, dilations, C,
                gate_dtype=jnp.float32, matmul_dtype=jnp.float32):
    """Pure-JAX reference mirroring the PyTorch forward (zero-pad causal convs,
    unflattened batch, true jax.nn.sigmoid).  Dtype args apply the same casts as the
    kernel so the bf16 path can be cross-checked too."""
    B, _, T = x_ncw.shape
    x = jnp.transpose(x_ncw, (0, 2, 1)).astype(jnp.float32)               # (B, T, 1)
    cur = x * params['w_in'][:, 0][None, None, :] + params['b_in'][:, 0][None, None, :]
    mix = jnp.zeros((B, T, C), jnp.float32)
    for l, d in enumerate(dilations):
        xl = cur
        shifted = jnp.pad(xl, ((0, 0), (d, 0), (0, 0)))[:, :T, :]
        h = (jnp.einsum('btc,oc->bto', shifted.astype(matmul_dtype),
                        params['w_h_t0'][l].astype(matmul_dtype),
                        preferred_element_type=jnp.float32)
             + jnp.einsum('btc,oc->bto', xl.astype(matmul_dtype),
                          params['w_h_t1'][l].astype(matmul_dtype),
                          preferred_element_type=jnp.float32)
             + params['b_h'][l][:, 0][None, None, :])
        gated = (jnp.tanh(h[..., :C].astype(gate_dtype))
                 * jax.nn.sigmoid(h[..., C:].astype(gate_dtype)))
        cur = (xl
               + jnp.einsum('btc,oc->bto', gated.astype(matmul_dtype),
                            params['w_r'][l].astype(matmul_dtype),
                            preferred_element_type=jnp.float32)
               + params['b_r'][l][:, 0][None, None, :])
        mix = mix + gated.astype(jnp.float32) * params['w_m'][l][:, 0][None, None, :]
    out = jnp.sum(mix, axis=-1, keepdims=True) + params['b_m'][0, 0]
    return jnp.transpose(out, (0, 2, 1))


if __name__ == "__main__":
    num_channels = 16
    dilation_depth = 3
    dilation_repeat = 2
    dilations = [2 ** j for _ in range(dilation_repeat) for j in range(dilation_depth)]

    B, T = 4, 64                    # gives 2 grid steps of 128 lanes each
    key = jax.random.PRNGKey(0)
    k_x, k_p = jax.random.split(key)
    x = jax.random.normal(k_x, (B, 1, T), dtype=jnp.float32)   # PyTorch NCW input
    params = init_params(k_p, num_channels, dilation_depth, dilation_repeat)

    # 1) Full-f32 check against the PyTorch-equivalent reference (exact semantics).
    y32 = jax.block_until_ready(
        wavenet_forward(x, params, dilations, num_channels,
                        gate_dtype=jnp.float32, matmul_dtype=jnp.float32))
    y_ref32 = wavenet_ref(x, params, dilations, num_channels,
                          gate_dtype=jnp.float32, matmul_dtype=jnp.float32)
    assert y32.shape == (B, 1, T), y32.shape
    assert jnp.allclose(y32, y_ref32, atol=1e-4, rtol=1e-4), \
        float(jnp.max(jnp.abs(y32 - y_ref32)))

    # 2) Production dtypes: bf16 matmul inputs everywhere, device-selected gate dtype.
    gdt = select_gate_dtype()
    mdt = jnp.bfloat16
    y = jax.block_until_ready(
        wavenet_forward(x, params, dilations, num_channels,
                        gate_dtype=gdt, matmul_dtype=mdt))
    y_ref = wavenet_ref(x, params, dilations, num_channels,
                        gate_dtype=gdt, matmul_dtype=mdt)
    assert y.shape == (B, 1, T), y.shape
    assert bool(jnp.all(jnp.isfinite(y)))
    assert jnp.allclose(y, y_ref, atol=1e-1, rtol=1e-1), \
        float(jnp.max(jnp.abs(y - y_ref)))

    print("KERNEL_OK")
</pallas_src>

<mosaic_0001>
module attributes {stable_mosaic.version = 11 : i64} {
  func.func @wavenet_kernel(%arg0: i32, %arg1: memref<1x128xf32, #tpu.memory_space<vmem>>, %arg2: memref<16x1xf32, #tpu.memory_space<vmem>>, %arg3: memref<16x1xf32, #tpu.memory_space<vmem>>, %arg4: memref<6x32x16xf32, #tpu.memory_space<vmem>>, %arg5: memref<6x32x16xf32, #tpu.memory_space<vmem>>, %arg6: memref<6x32x1xf32, #tpu.memory_space<vmem>>, %arg7: memref<6x16x16xf32, #tpu.memory_space<vmem>>, %arg8: memref<6x16x1xf32, #tpu.memory_space<vmem>>, %arg9: memref<6x16x1xf32, #tpu.memory_space<vmem>>, %arg10: memref<1x1xf32, #tpu.memory_space<vmem>>, %arg11: memref<1x128xf32, #tpu.memory_space<vmem>>) attributes {dimension_semantics = [#tpu.dimension_semantics<parallel>], iteration_bounds = array<i64: 2>, scalar_prefetch = 0 : i64, scratch_operands = 0 : i64, tpu.core_type = #tpu.core_type<tc>, window_params = [{transform_indices = @transform_0, window_bounds = array<i64: 1, 128>}, {pipeline_mode = #tpu.pipeline_mode<synchronous>, transform_indices = @transform_1, window_bounds = array<i64: 16, 1>}, {pipeline_mode = #tpu.pipeline_mode<synchronous>, transform_indices = @transform_2, window_bounds = array<i64: 16, 1>}, {pipeline_mode = #tpu.pipeline_mode<synchronous>, transform_indices = @transform_3, window_bounds = array<i64: 6, 32, 16>}, {pipeline_mode = #tpu.pipeline_mode<synchronous>, transform_indices = @transform_4, window_bounds = array<i64: 6, 32, 16>}, {pipeline_mode = #tpu.pipeline_mode<synchronous>, transform_indices = @transform_5, window_bounds = array<i64: 6, 32, 1>}, {pipeline_mode = #tpu.pipeline_mode<synchronous>, transform_indices = @transform_6, window_bounds = array<i64: 6, 16, 16>}, {pipeline_mode = #tpu.pipeline_mode<synchronous>, transform_indices = @transform_7, window_bounds = array<i64: 6, 16, 1>}, {pipeline_mode = #tpu.pipeline_mode<synchronous>, transform_indices = @transform_8, window_bounds = array<i64: 6, 16, 1>}, {pipeline_mode = #tpu.pipeline_mode<synchronous>, transform_indices = @transform_9, window_bounds = array<i64: 1, 1>}, {transform_indices = @transform_10, window_bounds = array<i64: 1, 128>}]} {
    %c0 = arith.constant 0 : index
    %c0_0 = arith.constant 0 : index
    %0 = vector.load %arg1[%c0, %c0_0] : memref<1x128xf32, #tpu.memory_space<vmem>>, vector<1x128xf32>
    %c0_1 = arith.constant 0 : index
    %c0_2 = arith.constant 0 : index
    %1 = vector.load %arg2[%c0_1, %c0_2] : memref<16x1xf32, #tpu.memory_space<vmem>>, vector<16x1xf32>
    %2 = vector.broadcast %1 : vector<16x1xf32> to vector<16x128xf32>
    %3 = vector.broadcast %0 : vector<1x128xf32> to vector<16x128xf32>
    %4 = arith.mulf %2, %3 : vector<16x128xf32>
    %c0_3 = arith.constant 0 : index
    %c0_4 = arith.constant 0 : index
    %5 = vector.load %arg3[%c0_3, %c0_4] : memref<16x1xf32, #tpu.memory_space<vmem>>, vector<16x1xf32>
    %6 = vector.broadcast %5 : vector<16x1xf32> to vector<16x128xf32>
    %7 = arith.addf %4, %6 : vector<16x128xf32>
    %8 = tpu.iota {dimensions = array<i32: 1>} : vector<16x128xi32>
    %c64_i32 = arith.constant 64 : i32
    %c0_i32 = arith.constant 0 : i32
    %9 = arith.cmpi eq, %c64_i32, %c0_i32 : i32
    %c1_i32 = arith.constant 1 : i32
    %10 = arith.select %9, %c1_i32, %c64_i32 : i32
    %11 = vector.broadcast %10 : i32 to vector<16x128xi32>
    %12 = arith.remsi %8, %11 : vector<16x128xi32>
    %c0_i32_5 = arith.constant 0 : i32
    %13 = vector.broadcast %c0_i32_5 : i32 to vector<16x128xi32>
    %14 = arith.cmpi ne, %12, %13 : vector<16x128xi32>
    %c0_i32_6 = arith.constant 0 : i32
    %15 = vector.broadcast %c0_i32_6 : i32 to vector<16x128xi32>
    %16 = arith.cmpi slt, %12, %15 : vector<16x128xi32>
    %c0_i32_7 = arith.constant 0 : i32
    %17 = arith.cmpi slt, %10, %c0_i32_7 : i32
    %18 = vector.broadcast %17 : i1 to vector<16x128xi1>
    %19 = vector.broadcast %18 : vector<16x128xi1> to vector<16x128xi1>
    %20 = arith.xori %16, %19 : vector<16x128xi1>
    %21 = arith.andi %20, %14 : vector<16x128xi1>
    %22 = vector.broadcast %10 : i32 to vector<16x128xi32>
    %23 = arith.addi %12, %22 : vector<16x128xi32>
    %24 = arith.select %21, %23, %12 : vector<16x128xi1>, vector<16x128xi32>
    %c1_i32_8 = arith.constant 1 : i32
    %25 = vector.broadcast %c1_i32_8 : i32 to vector<16x128xi32>
    %26 = arith.cmpi sge, %24, %25 : vector<16x128xi32>
    %c2_i32 = arith.constant 2 : i32
    %27 = vector.broadcast %c2_i32 : i32 to vector<16x128xi32>
    %28 = arith.cmpi sge, %24, %27 : vector<16x128xi32>
    %c4_i32 = arith.constant 4 : i32
    %29 = vector.broadcast %c4_i32 : i32 to vector<16x128xi32>
    %30 = arith.cmpi sge, %24, %29 : vector<16x128xi32>
    %cst = arith.constant 0.000000e+00 : f32
    %31 = vector.broadcast %cst : f32 to vector<16x128xf32>
    %c1_i32_9 = arith.constant 1 : i32
    %32 = tpu.dynamic_rotate %7 by %c1_i32_9 dim 1 : vector<16x128xf32>, i32 -> vector<16x128xf32>
    %cst_10 = arith.constant 0.000000e+00 : f32
    %33 = vector.broadcast %cst_10 : f32 to vector<16x128xf32>
    %34 = arith.select %26, %32, %33 : vector<16x128xi1>, vector<16x128xf32>
    %c0_11 = arith.constant 0 : index
    %c0_12 = arith.constant 0 : index
    %c0_13 = arith.constant 0 : index
    %35 = vector.load %arg4[%c0_11, %c0_12, %c0_13] : memref<6x32x16xf32, #tpu.memory_space<vmem>>, vector<1x32x16xf32>
    %36 = vector.shape_cast %35 : vector<1x32x16xf32> to vector<32x16xf32>
    %cst_14 = arith.constant dense<0.000000e+00> : vector<32x128xf32>
    %37 = tpu.matmul %36, %34, %cst_14 {dimension_numbers = #tpu.dot_dimension_numbers<[1], [0], [0], [1], [0, 0, 1, 1], [], []>} : vector<32x16xf32>, vector<16x128xf32>, vector<32x128xf32> -> vector<32x128xf32>
    %c0_15 = arith.constant 0 : index
    %c0_16 = arith.constant 0 : index
    %c0_17 = arith.constant 0 : index
    %38 = vector.load %arg5[%c0_15, %c0_16, %c0_17] : memref<6x32x16xf32, #tpu.memory_space<vmem>>, vector<1x32x16xf32>
    %39 = vector.shape_cast %38 : vector<1x32x16xf32> to vector<32x16xf32>
    %cst_18 = arith.constant dense<0.000000e+00> : vector<32x128xf32>
    %40 = tpu.matmul %39, %7, %cst_18 {dimension_numbers = #tpu.dot_dimension_numbers<[1], [0], [0], [1], [0, 0, 1, 1], [], []>} : vector<32x16xf32>, vector<16x128xf32>, vector<32x128xf32> -> vector<32x128xf32>
    %41 = arith.addf %37, %40 : vector<32x128xf32>
    %c0_19 = arith.constant 0 : index
    %c0_20 = arith.constant 0 : index
    %c0_21 = arith.constant 0 : index
    %42 = vector.load %arg6[%c0_19, %c0_20, %c0_21] : memref<6x32x1xf32, #tpu.memory_space<vmem>>, vector<1x32x1xf32>
    %43 = vector.shape_cast %42 : vector<1x32x1xf32> to vector<32x1xf32>
    %44 = vector.broadcast %43 : vector<32x1xf32> to vector<32x128xf32>
    %45 = arith.addf %41, %44 : vector<32x128xf32>
    %46 = vector.extract_strided_slice %45 {offsets = [0, 0], sizes = [16, 128], strides = [1, 1]} : vector<32x128xf32> to vector<16x128xf32>
    %47 = math.tanh %46 : vector<16x128xf32>
    %48 = vector.extract_strided_slice %45 {offsets = [16, 0], sizes = [16, 128], strides = [1, 1]} : vector<32x128xf32> to vector<16x128xf32>
    %cst_22 = arith.constant 5.000000e-01 : f32
    %49 = vector.broadcast %cst_22 : f32 to vector<16x128xf32>
    %50 = arith.mulf %49, %48 : vector<16x128xf32>
    %51 = math.tanh %50 : vector<16x128xf32>
    %cst_23 = arith.constant 5.000000e-01 : f32
    %52 = vector.broadcast %cst_23 : f32 to vector<16x128xf32>
    %53 = arith.mulf %52, %51 : vector<16x128xf32>
    %cst_24 = arith.constant 5.000000e-01 : f32
    %54 = vector.broadcast %cst_24 : f32 to vector<16x128xf32>
    %55 = arith.addf %53, %54 : vector<16x128xf32>
    %56 = arith.mulf %47, %55 : vector<16x128xf32>
    %c0_25 = arith.constant 0 : index
    %c0_26 = arith.constant 0 : index
    %c0_27 = arith.constant 0 : index
    %57 = vector.load %arg7[%c0_25, %c0_26, %c0_27] : memref<6x16x16xf32, #tpu.memory_space<vmem>>, vector<1x16x16xf32>
    %58 = vector.shape_cast %57 : vector<1x16x16xf32> to vector<16x16xf32>
    %cst_28 = arith.constant dense<0.000000e+00> : vector<16x128xf32>
    %59 = tpu.matmul %58, %56, %cst_28 {dimension_numbers = #tpu.dot_dimension_numbers<[1], [0], [0], [1], [0, 0, 1, 1], [], []>} : vector<16x16xf32>, vector<16x128xf32>, vector<16x128xf32> -> vector<16x128xf32>
    %60 = arith.addf %7, %59 : vector<16x128xf32>
    %c0_29 = arith.constant 0 : index
    %c0_30 = arith.constant 0 : index
    %c0_31 = arith.constant 0 : index
    %61 = vector.load %arg8[%c0_29, %c0_30, %c0_31] : memref<6x16x1xf32, #tpu.memory_space<vmem>>, vector<1x16x1xf32>
    %62 = vector.shape_cast %61 : vector<1x16x1xf32> to vector<16x1xf32>
    %63 = vector.broadcast %62 : vector<16x1xf32> to vector<16x128xf32>
    %64 = arith.addf %60, %63 : vector<16x128xf32>
    %c0_32 = arith.constant 0 : index
    %c0_33 = arith.constant 0 : index
    %c0_34 = arith.constant 0 : index
    %65 = vector.load %arg9[%c0_32, %c0_33, %c0_34] : memref<6x16x1xf32, #tpu.memory_space<vmem>>, vector<1x16x1xf32>
    %66 = vector.shape_cast %65 : vector<1x16x1xf32> to vector<16x1xf32>
    %67 = vector.broadcast %66 : vector<16x1xf32> to vector<16x128xf32>
    %68 = arith.mulf %56, %67 : vector<16x128xf32>
    %69 = arith.addf %31, %68 : vector<16x128xf32>
    %c2_i32_35 = arith.constant 2 : i32
    %70 = tpu.dynamic_rotate %64 by %c2_i32_35 dim 1 : vector<16x128xf32>, i32 -> vector<16x128xf32>
    %cst_36 = arith.constant 0.000000e+00 : f32
    %71 = vector.broadcast %cst_36 : f32 to vector<16x128xf32>
    %72 = arith.select %28, %70, %71 : vector<16x128xi1>, vector<16x128xf32>
    %c1 = arith.constant 1 : index
    %c0_37 = arith.constant 0 : index
    %c0_38 = arith.constant 0 : index
    %73 = vector.load %arg4[%c1, %c0_37, %c0_38] : memref<6x32x16xf32, #tpu.memory_space<vmem>>, vector<1x32x16xf32>
    %74 = vector.shape_cast %73 : vector<1x32x16xf32> to vector<32x16xf32>
    %cst_39 = arith.constant dense<0.000000e+00> : vector<32x128xf32>
    %75 = tpu.matmul %74, %72, %cst_39 {dimension_numbers = #tpu.dot_dimension_numbers<[1], [0], [0], [1], [0, 0, 1, 1], [], []>} : vector<32x16xf32>, vector<16x128xf32>, vector<32x128xf32> -> vector<32x128xf32>
    %c1_40 = arith.constant 1 : index
    %c0_41 = arith.constant 0 : index
    %c0_42 = arith.constant 0 : index
    %76 = vector.load %arg5[%c1_40, %c0_41, %c0_42] : memref<6x32x16xf32, #tpu.memory_space<vmem>>, vector<1x32x16xf32>
    %77 = vector.shape_cast %76 : vector<1x32x16xf32> to vector<32x16xf32>
    %cst_43 = arith.constant dense<0.000000e+00> : vector<32x128xf32>
    %78 = tpu.matmul %77, %64, %cst_43 {dimension_numbers = #tpu.dot_dimension_numbers<[1], [0], [0], [1], [0, 0, 1, 1], [], []>} : vector<32x16xf32>, vector<16x128xf32>, vector<32x128xf32> -> vector<32x128xf32>
    %79 = arith.addf %75, %78 : vector<32x128xf32>
    %c1_44 = arith.constant 1 : index
    %c0_45 = arith.constant 0 : index
    %c0_46 = arith.constant 0 : index
    %80 = vector.load %arg6[%c1_44, %c0_45, %c0_46] : memref<6x32x1xf32, #tpu.memory_space<vmem>>, vector<1x32x1xf32>
    %81 = vector.shape_cast %80 : vector<1x32x1xf32> to vector<32x1xf32>
    %82 = vector.broadcast %81 : vector<32x1xf32> to vector<32x128xf32>
    %83 = arith.addf %79, %82 : vector<32x128xf32>
    %84 = vector.extract_strided_slice %83 {offsets = [0, 0], sizes = [16, 128], strides = [1, 1]} : vector<32x128xf32> to vector<16x128xf32>
    %85 = math.tanh %84 : vector<16x128xf32>
    %86 = vector.extract_strided_slice %83 {offsets = [16, 0], sizes = [16, 128], strides = [1, 1]} : vector<32x128xf32> to vector<16x128xf32>
    %cst_47 = arith.constant 5.000000e-01 : f32
    %87 = vector.broadcast %cst_47 : f32 to vector<16x128xf32>
    %88 = arith.mulf %87, %86 : vector<16x128xf32>
    %89 = math.tanh %88 : vector<16x128xf32>
    %cst_48 = arith.constant 5.000000e-01 : f32
    %90 = vector.broadcast %cst_48 : f32 to vector<16x128xf32>
    %91 = arith.mulf %90, %89 : vector<16x128xf32>
    %cst_49 = arith.constant 5.000000e-01 : f32
    %92 = vector.broadcast %cst_49 : f32 to vector<16x128xf32>
    %93 = arith.addf %91, %92 : vector<16x128xf32>
    %94 = arith.mulf %85, %93 : vector<16x128xf32>
    %c1_50 = arith.constant 1 : index
    %c0_51 = arith.constant 0 : index
    %c0_52 = arith.constant 0 : index
    %95 = vector.load %arg7[%c1_50, %c0_51, %c0_52] : memref<6x16x16xf32, #tpu.memory_space<vmem>>, vector<1x16x16xf32>
    %96 = vector.shape_cast %95 : vector<1x16x16xf32> to vector<16x16xf32>
    %cst_53 = arith.constant dense<0.000000e+00> : vector<16x128xf32>
    %97 = tpu.matmul %96, %94, %cst_53 {dimension_numbers = #tpu.dot_dimension_numbers<[1], [0], [0], [1], [0, 0, 1, 1], [], []>} : vector<16x16xf32>, vector<16x128xf32>, vector<16x128xf32> -> vector<16x128xf32>
    %98 = arith.addf %64, %97 : vector<16x128xf32>
    %c1_54 = arith.constant 1 : index
    %c0_55 = arith.constant 0 : index
    %c0_56 = arith.constant 0 : index
    %99 = vector.load %arg8[%c1_54, %c0_55, %c0_56] : memref<6x16x1xf32, #tpu.memory_space<vmem>>, vector<1x16x1xf32>
    %100 = vector.shape_cast %99 : vector<1x16x1xf32> to vector<16x1xf32>
    %101 = vector.broadcast %100 : vector<16x1xf32> to vector<16x128xf32>
    %102 = arith.addf %98, %101 : vector<16x128xf32>
    %c1_57 = arith.constant 1 : index
    %c0_58 = arith.constant 0 : index
    %c0_59 = arith.constant 0 : index
    %103 = vector.load %arg9[%c1_57, %c0_58, %c0_59] : memref<6x16x1xf32, #tpu.memory_space<vmem>>, vector<1x16x1xf32>
    %104 = vector.shape_cast %103 : vector<1x16x1xf32> to vector<16x1xf32>
    %105 = vector.broadcast %104 : vector<16x1xf32> to vector<16x128xf32>
    %106 = arith.mulf %94, %105 : vector<16x128xf32>
    %107 = arith.addf %69, %106 : vector<16x128xf32>
    %c4_i32_60 = arith.constant 4 : i32
    %108 = tpu.dynamic_rotate %102 by %c4_i32_60 dim 1 : vector<16x128xf32>, i32 -> vector<16x128xf32>
    %cst_61 = arith.constant 0.000000e+00 : f32
    %109 = vector.broadcast %cst_61 : f32 to vector<16x128xf32>
    %110 = arith.select %30, %108, %109 : vector<16x128xi1>, vector<16x128xf32>
    %c2 = arith.constant 2 : index
    %c0_62 = arith.constant 0 : index
    %c0_63 = arith.constant 0 : index
    %111 = vector.load %arg4[%c2, %c0_62, %c0_63] : memref<6x32x16xf32, #tpu.memory_space<vmem>>, vector<1x32x16xf32>
    %112 = vector.shape_cast %111 : vector<1x32x16xf32> to vector<32x16xf32>
    %cst_64 = arith.constant dense<0.000000e+00> : vector<32x128xf32>
    %113 = tpu.matmul %112, %110, %cst_64 {dimension_numbers = #tpu.dot_dimension_numbers<[1], [0], [0], [1], [0, 0, 1, 1], [], []>} : vector<32x16xf32>, vector<16x128xf32>, vector<32x128xf32> -> vector<32x128xf32>
    %c2_65 = arith.constant 2 : index
    %c0_66 = arith.constant 0 : index
    %c0_67 = arith.constant 0 : index
    %114 = vector.load %arg5[%c2_65, %c0_66, %c0_67] : memref<6x32x16xf32, #tpu.memory_space<vmem>>, vector<1x32x16xf32>
    %115 = vector.shape_cast %114 : vector<1x32x16xf32> to vector<32x16xf32>
    %cst_68 = arith.constant dense<0.000000e+00> : vector<32x128xf32>
    %116 = tpu.matmul %115, %102, %cst_68 {dimension_numbers = #tpu.dot_dimension_numbers<[1], [0], [0], [1], [0, 0, 1, 1], [], []>} : vector<32x16xf32>, vector<16x128xf32>, vector<32x128xf32> -> vector<32x128xf32>
    %117 = arith.addf %113, %116 : vector<32x128xf32>
    %c2_69 = arith.constant 2 : index
    %c0_70 = arith.constant 0 : index
    %c0_71 = arith.constant 0 : index
    %118 = vector.load %arg6[%c2_69, %c0_70, %c0_71] : memref<6x32x1xf32, #tpu.memory_space<vmem>>, vector<1x32x1xf32>
    %119 = vector.shape_cast %118 : vector<1x32x1xf32> to vector<32x1xf32>
    %120 = vector.broadcast %119 : vector<32x1xf32> to vector<32x128xf32>
    %121 = arith.addf %117, %120 : vector<32x128xf32>
    %122 = vector.extract_strided_slice %121 {offsets = [0, 0], sizes = [16, 128], strides = [1, 1]} : vector<32x128xf32> to vector<16x128xf32>
    %123 = math.tanh %122 : vector<16x128xf32>
    %124 = vector.extract_strided_slice %121 {offsets = [16, 0], sizes = [16, 128], strides = [1, 1]} : vector<32x128xf32> to vector<16x128xf32>
    %cst_72 = arith.constant 5.000000e-01 : f32
    %125 = vector.broadcast %cst_72 : f32 to vector<16x128xf32>
    %126 = arith.mulf %125, %124 : vector<16x128xf32>
    %127 = math.tanh %126 : vector<16x128xf32>
    %cst_73 = arith.constant 5.000000e-01 : f32
    %128 = vector.broadcast %cst_73 : f32 to vector<16x128xf32>
    %129 = arith.mulf %128, %127 : vector<16x128xf32>
    %cst_74 = arith.constant 5.000000e-01 : f32
    %130 = vector.broadcast %cst_74 : f32 to vector<16x128xf32>
    %131 = arith.addf %129, %130 : vector<16x128xf32>
    %132 = arith.mulf %123, %131 : vector<16x128xf32>
    %c2_75 = arith.constant 2 : index
    %c0_76 = arith.constant 0 : index
    %c0_77 = arith.constant 0 : index
    %133 = vector.load %arg7[%c2_75, %c0_76, %c0_77] : memref<6x16x16xf32, #tpu.memory_space<vmem>>, vector<1x16x16xf32>
    %134 = vector.shape_cast %133 : vector<1x16x16xf32> to vector<16x16xf32>
    %cst_78 = arith.constant dense<0.000000e+00> : vector<16x128xf32>
    %135 = tpu.matmul %134, %132, %cst_78 {dimension_numbers = #tpu.dot_dimension_numbers<[1], [0], [0], [1], [0, 0, 1, 1], [], []>} : vector<16x16xf32>, vector<16x128xf32>, vector<16x128xf32> -> vector<16x128xf32>
    %136 = arith.addf %102, %135 : vector<16x128xf32>
    %c2_79 = arith.constant 2 : index
    %c0_80 = arith.constant 0 : index
    %c0_81 = arith.constant 0 : index
    %137 = vector.load %arg8[%c2_79, %c0_80, %c0_81] : memref<6x16x1xf32, #tpu.memory_space<vmem>>, vector<1x16x1xf32>
    %138 = vector.shape_cast %137 : vector<1x16x1xf32> to vector<16x1xf32>
    %139 = vector.broadcast %138 : vector<16x1xf32> to vector<16x128xf32>
    %140 = arith.addf %136, %139 : vector<16x128xf32>
    %c2_82 = arith.constant 2 : index
    %c0_83 = arith.constant 0 : index
    %c0_84 = arith.constant 0 : index
    %141 = vector.load %arg9[%c2_82, %c0_83, %c0_84] : memref<6x16x1xf32, #tpu.memory_space<vmem>>, vector<1x16x1xf32>
    %142 = vector.shape_cast %141 : vector<1x16x1xf32> to vector<16x1xf32>
    %143 = vector.broadcast %142 : vector<16x1xf32> to vector<16x128xf32>
    %144 = arith.mulf %132, %143 : vector<16x128xf32>
    %145 = arith.addf %107, %144 : vector<16x128xf32>
    %c1_i32_85 = arith.constant 1 : i32
    %146 = tpu.dynamic_rotate %140 by %c1_i32_85 dim 1 : vector<16x128xf32>, i32 -> vector<16x128xf32>
    %cst_86 = arith.constant 0.000000e+00 : f32
    %147 = vector.broadcast %cst_86 : f32 to vector<16x128xf32>
    %148 = arith.select %26, %146, %147 : vector<16x128xi1>, vector<16x128xf32>
    %c3 = arith.constant 3 : index
    %c0_87 = arith.constant 0 : index
    %c0_88 = arith.constant 0 : index
    %149 = vector.load %arg4[%c3, %c0_87, %c0_88] : memref<6x32x16xf32, #tpu.memory_space<vmem>>, vector<1x32x16xf32>
    %150 = vector.shape_cast %149 : vector<1x32x16xf32> to vector<32x16xf32>
    %cst_89 = arith.constant dense<0.000000e+00> : vector<32x128xf32>
    %151 = tpu.matmul %150, %148, %cst_89 {dimension_numbers = #tpu.dot_dimension_numbers<[1], [0], [0], [1], [0, 0, 1, 1], [], []>} : vector<32x16xf32>, vector<16x128xf32>, vector<32x128xf32> -> vector<32x128xf32>
    %c3_90 = arith.constant 3 : index
    %c0_91 = arith.constant 0 : index
    %c0_92 = arith.constant 0 : index
    %152 = vector.load %arg5[%c3_90, %c0_91, %c0_92] : memref<6x32x16xf32, #tpu.memory_space<vmem>>, vector<1x32x16xf32>
    %153 = vector.shape_cast %152 : vector<1x32x16xf32> to vector<32x16xf32>
    %cst_93 = arith.constant dense<0.000000e+00> : vector<32x128xf32>
    %154 = tpu.matmul %153, %140, %cst_93 {dimension_numbers = #tpu.dot_dimension_numbers<[1], [0], [0], [1], [0, 0, 1, 1], [], []>} : vector<32x16xf32>, vector<16x128xf32>, vector<32x128xf32> -> vector<32x128xf32>
    %155 = arith.addf %151, %154 : vector<32x128xf32>
    %c3_94 = arith.constant 3 : index
    %c0_95 = arith.constant 0 : index
    %c0_96 = arith.constant 0 : index
    %156 = vector.load %arg6[%c3_94, %c0_95, %c0_96] : memref<6x32x1xf32, #tpu.memory_space<vmem>>, vector<1x32x1xf32>
    %157 = vector.shape_cast %156 : vector<1x32x1xf32> to vector<32x1xf32>
    %158 = vector.broadcast %157 : vector<32x1xf32> to vector<32x128xf32>
    %159 = arith.addf %155, %158 : vector<32x128xf32>
    %160 = vector.extract_strided_slice %159 {offsets = [0, 0], sizes = [16, 128], strides = [1, 1]} : vector<32x128xf32> to vector<16x128xf32>
    %161 = math.tanh %160 : vector<16x128xf32>
    %162 = vector.extract_strided_slice %159 {offsets = [16, 0], sizes = [16, 128], strides = [1, 1]} : vector<32x128xf32> to vector<16x128xf32>
    %cst_97 = arith.constant 5.000000e-01 : f32
    %163 = vector.broadcast %cst_97 : f32 to vector<16x128xf32>
    %164 = arith.mulf %163, %162 : vector<16x128xf32>
    %165 = math.tanh %164 : vector<16x128xf32>
    %cst_98 = arith.constant 5.000000e-01 : f32
    %166 = vector.broadcast %cst_98 : f32 to vector<16x128xf32>
    %167 = arith.mulf %166, %165 : vector<16x128xf32>
    %cst_99 = arith.constant 5.000000e-01 : f32
    %168 = vector.broadcast %cst_99 : f32 to vector<16x128xf32>
    %169 = arith.addf %167, %168 : vector<16x128xf32>
    %170 = arith.mulf %161, %169 : vector<16x128xf32>
    %c3_100 = arith.constant 3 : index
    %c0_101 = arith.constant 0 : index
    %c0_102 = arith.constant 0 : index
    %171 = vector.load %arg7[%c3_100, %c0_101, %c0_102] : memref<6x16x16xf32, #tpu.memory_space<vmem>>, vector<1x16x16xf32>
    %172 = vector.shape_cast %171 : vector<1x16x16xf32> to vector<16x16xf32>
    %cst_103 = arith.constant dense<0.000000e+00> : vector<16x128xf32>
    %173 = tpu.matmul %172, %170, %cst_103 {dimension_numbers = #tpu.dot_dimension_numbers<[1], [0], [0], [1], [0, 0, 1, 1], [], []>} : vector<16x16xf32>, vector<16x128xf32>, vector<16x128xf32> -> vector<16x128xf32>
    %174 = arith.addf %140, %173 : vector<16x128xf32>
    %c3_104 = arith.constant 3 : index
    %c0_105 = arith.constant 0 : index
    %c0_106 = arith.constant 0 : index
    %175 = vector.load %arg8[%c3_104, %c0_105, %c0_106] : memref<6x16x1xf32, #tpu.memory_space<vmem>>, vector<1x16x1xf32>
    %176 = vector.shape_cast %175 : vector<1x16x1xf32> to vector<16x1xf32>
    %177 = vector.broadcast %176 : vector<16x1xf32> to vector<16x128xf32>
    %178 = arith.addf %174, %177 : vector<16x128xf32>
    %c3_107 = arith.constant 3 : index
    %c0_108 = arith.constant 0 : index
    %c0_109 = arith.constant 0 : index
    %179 = vector.load %arg9[%c3_107, %c0_108, %c0_109] : memref<6x16x1xf32, #tpu.memory_space<vmem>>, vector<1x16x1xf32>
    %180 = vector.shape_cast %179 : vector<1x16x1xf32> to vector<16x1xf32>
    %181 = vector.broadcast %180 : vector<16x1xf32> to vector<16x128xf32>
    %182 = arith.mulf %170, %181 : vector<16x128xf32>
    %183 = arith.addf %145, %182 : vector<16x128xf32>
    %c2_i32_110 = arith.constant 2 : i32
    %184 = tpu.dynamic_rotate %178 by %c2_i32_110 dim 1 : vector<16x128xf32>, i32 -> vector<16x128xf32>
    %cst_111 = arith.constant 0.000000e+00 : f32
    %185 = vector.broadcast %cst_111 : f32 to vector<16x128xf32>
    %186 = arith.select %28, %184, %185 : vector<16x128xi1>, vector<16x128xf32>
    %c4 = arith.constant 4 : index
    %c0_112 = arith.constant 0 : index
    %c0_113 = arith.constant 0 : index
    %187 = vector.load %arg4[%c4, %c0_112, %c0_113] : memref<6x32x16xf32, #tpu.memory_space<vmem>>, vector<1x32x16xf32>
    %188 = vector.shape_cast %187 : vector<1x32x16xf32> to vector<32x16xf32>
    %cst_114 = arith.constant dense<0.000000e+00> : vector<32x128xf32>
    %189 = tpu.matmul %188, %186, %cst_114 {dimension_numbers = #tpu.dot_dimension_numbers<[1], [0], [0], [1], [0, 0, 1, 1], [], []>} : vector<32x16xf32>, vector<16x128xf32>, vector<32x128xf32> -> vector<32x128xf32>
    %c4_115 = arith.constant 4 : index
    %c0_116 = arith.constant 0 : index
    %c0_117 = arith.constant 0 : index
    %190 = vector.load %arg5[%c4_115, %c0_116, %c0_117] : memref<6x32x16xf32, #tpu.memory_space<vmem>>, vector<1x32x16xf32>
    %191 = vector.shape_cast %190 : vector<1x32x16xf32> to vector<32x16xf32>
    %cst_118 = arith.constant dense<0.000000e+00> : vector<32x128xf32>
    %192 = tpu.matmul %191, %178, %cst_118 {dimension_numbers = #tpu.dot_dimension_numbers<[1], [0], [0], [1], [0, 0, 1, 1], [], []>} : vector<32x16xf32>, vector<16x128xf32>, vector<32x128xf32> -> vector<32x128xf32>
    %193 = arith.addf %189, %192 : vector<32x128xf32>
    %c4_119 = arith.constant 4 : index
    %c0_120 = arith.constant 0 : index
    %c0_121 = arith.constant 0 : index
    %194 = vector.load %arg6[%c4_119, %c0_120, %c0_121] : memref<6x32x1xf32, #tpu.memory_space<vmem>>, vector<1x32x1xf32>
    %195 = vector.shape_cast %194 : vector<1x32x1xf32> to vector<32x1xf32>
    %196 = vector.broadcast %195 : vector<32x1xf32> to vector<32x128xf32>
    %197 = arith.addf %193, %196 : vector<32x128xf32>
    %198 = vector.extract_strided_slice %197 {offsets = [0, 0], sizes = [16, 128], strides = [1, 1]} : vector<32x128xf32> to vector<16x128xf32>
    %199 = math.tanh %198 : vector<16x128xf32>
    %200 = vector.extract_strided_slice %197 {offsets = [16, 0], sizes = [16, 128], strides = [1, 1]} : vector<32x128xf32> to vector<16x128xf32>
    %cst_122 = arith.constant 5.000000e-01 : f32
    %201 = vector.broadcast %cst_122 : f32 to vector<16x128xf32>
    %202 = arith.mulf %201, %200 : vector<16x128xf32>
    %203 = math.tanh %202 : vector<16x128xf32>
    %cst_123 = arith.constant 5.000000e-01 : f32
    %204 = vector.broadcast %cst_123 : f32 to vector<16x128xf32>
    %205 = arith.mulf %204, %203 : vector<16x128xf32>
    %cst_124 = arith.constant 5.000000e-01 : f32
    %206 = vector.broadcast %cst_124 : f32 to vector<16x128xf32>
    %207 = arith.addf %205, %206 : vector<16x128xf32>
    %208 = arith.mulf %199, %207 : vector<16x128xf32>
    %c4_125 = arith.constant 4 : index
    %c0_126 = arith.constant 0 : index
    %c0_127 = arith.constant 0 : index
    %209 = vector.load %arg7[%c4_125, %c0_126, %c0_127] : memref<6x16x16xf32, #tpu.memory_space<vmem>>, vector<1x16x16xf32>
    %210 = vector.shape_cast %209 : vector<1x16x16xf32> to vector<16x16xf32>
    %cst_128 = arith.constant dense<0.000000e+00> : vector<16x128xf32>
    %211 = tpu.matmul %210, %208, %cst_128 {dimension_numbers = #tpu.dot_dimension_numbers<[1], [0], [0], [1], [0, 0, 1, 1], [], []>} : vector<16x16xf32>, vector<16x128xf32>, vector<16x128xf32> -> vector<16x128xf32>
    %212 = arith.addf %178, %211 : vector<16x128xf32>
    %c4_129 = arith.constant 4 : index
    %c0_130 = arith.constant 0 : index
    %c0_131 = arith.constant 0 : index
    %213 = vector.load %arg8[%c4_129, %c0_130, %c0_131] : memref<6x16x1xf32, #tpu.memory_space<vmem>>, vector<1x16x1xf32>
    %214 = vector.shape_cast %213 : vector<1x16x1xf32> to vector<16x1xf32>
    %215 = vector.broadcast %214 : vector<16x1xf32> to vector<16x128xf32>
    %216 = arith.addf %212, %215 : vector<16x128xf32>
    %c4_132 = arith.constant 4 : index
    %c0_133 = arith.constant 0 : index
    %c0_134 = arith.constant 0 : index
    %217 = vector.load %arg9[%c4_132, %c0_133, %c0_134] : memref<6x16x1xf32, #tpu.memory_space<vmem>>, vector<1x16x1xf32>
    %218 = vector.shape_cast %217 : vector<1x16x1xf32> to vector<16x1xf32>
    %219 = vector.broadcast %218 : vector<16x1xf32> to vector<16x128xf32>
    %220 = arith.mulf %208, %219 : vector<16x128xf32>
    %221 = arith.addf %183, %220 : vector<16x128xf32>
    %c4_i32_135 = arith.constant 4 : i32
    %222 = tpu.dynamic_rotate %216 by %c4_i32_135 dim 1 : vector<16x128xf32>, i32 -> vector<16x128xf32>
    %cst_136 = arith.constant 0.000000e+00 : f32
    %223 = vector.broadcast %cst_136 : f32 to vector<16x128xf32>
    %224 = arith.select %30, %222, %223 : vector<16x128xi1>, vector<16x128xf32>
    %c5 = arith.constant 5 : index
    %c0_137 = arith.constant 0 : index
    %c0_138 = arith.constant 0 : index
    %225 = vector.load %arg4[%c5, %c0_137, %c0_138] : memref<6x32x16xf32, #tpu.memory_space<vmem>>, vector<1x32x16xf32>
    %226 = vector.shape_cast %225 : vector<1x32x16xf32> to vector<32x16xf32>
    %cst_139 = arith.constant dense<0.000000e+00> : vector<32x128xf32>
    %227 = tpu.matmul %226, %224, %cst_139 {dimension_numbers = #tpu.dot_dimension_numbers<[1], [0], [0], [1], [0, 0, 1, 1], [], []>} : vector<32x16xf32>, vector<16x128xf32>, vector<32x128xf32> -> vector<32x128xf32>
    %c5_140 = arith.constant 5 : index
    %c0_141 = arith.constant 0 : index
    %c0_142 = arith.constant 0 : index
    %228 = vector.load %arg5[%c5_140, %c0_141, %c0_142] : memref<6x32x16xf32, #tpu.memory_space<vmem>>, vector<1x32x16xf32>
    %229 = vector.shape_cast %228 : vector<1x32x16xf32> to vector<32x16xf32>
    %cst_143 = arith.constant dense<0.000000e+00> : vector<32x128xf32>
    %230 = tpu.matmul %229, %216, %cst_143 {dimension_numbers = #tpu.dot_dimension_numbers<[1], [0], [0], [1], [0, 0, 1, 1], [], []>} : vector<32x16xf32>, vector<16x128xf32>, vector<32x128xf32> -> vector<32x128xf32>
    %231 = arith.addf %227, %230 : vector<32x128xf32>
    %c5_144 = arith.constant 5 : index
    %c0_145 = arith.constant 0 : index
    %c0_146 = arith.constant 0 : index
    %232 = vector.load %arg6[%c5_144, %c0_145, %c0_146] : memref<6x32x1xf32, #tpu.memory_space<vmem>>, vector<1x32x1xf32>
    %233 = vector.shape_cast %232 : vector<1x32x1xf32> to vector<32x1xf32>
    %234 = vector.broadcast %233 : vector<32x1xf32> to vector<32x128xf32>
    %235 = arith.addf %231, %234 : vector<32x128xf32>
    %236 = vector.extract_strided_slice %235 {offsets = [0, 0], sizes = [16, 128], strides = [1, 1]} : vector<32x128xf32> to vector<16x128xf32>
    %237 = math.tanh %236 : vector<16x128xf32>
    %238 = vector.extract_strided_slice %235 {offsets = [16, 0], sizes = [16, 128], strides = [1, 1]} : vector<32x128xf32> to vector<16x128xf32>
    %cst_147 = arith.constant 5.000000e-01 : f32
    %239 = vector.broadcast %cst_147 : f32 to vector<16x128xf32>
    %240 = arith.mulf %239, %238 : vector<16x128xf32>
    %241 = math.tanh %240 : vector<16x128xf32>
    %cst_148 = arith.constant 5.000000e-01 : f32
    %242 = vector.broadcast %cst_148 : f32 to vector<16x128xf32>
    %243 = arith.mulf %242, %241 : vector<16x128xf32>
    %cst_149 = arith.constant 5.000000e-01 : f32
    %244 = vector.broadcast %cst_149 : f32 to vector<16x128xf32>
    %245 = arith.addf %243, %244 : vector<16x128xf32>
    %246 = arith.mulf %237, %245 : vector<16x128xf32>
    %c5_150 = arith.constant 5 : index
    %c0_151 = arith.constant 0 : index
    %c0_152 = arith.constant 0 : index
    %247 = vector.load %arg9[%c5_150, %c0_151, %c0_152] : memref<6x16x1xf32, #tpu.memory_space<vmem>>, vector<1x16x1xf32>
    %248 = vector.shape_cast %247 : vector<1x16x1xf32> to vector<16x1xf32>
    %249 = vector.broadcast %248 : vector<16x1xf32> to vector<16x128xf32>
    %250 = arith.mulf %246, %249 : vector<16x128xf32>
    %251 = arith.addf %221, %250 : vector<16x128xf32>
    %cst_153 = arith.constant dense<0.000000e+00> : vector<128xf32>
    %252 = vector.multi_reduction <add>, %251, %cst_153 [0] : vector<16x128xf32> to vector<128xf32>
    %253 = vector.shape_cast %252 : vector<128xf32> to vector<1x128xf32>
    %c0_154 = arith.constant 0 : index
    %c0_155 = arith.constant 0 : index
    %254 = vector.load %arg10[%c0_154, %c0_155] : memref<1x1xf32, #tpu.memory_space<vmem>>, vector<1x1xf32>
    %255 = vector.broadcast %254 : vector<1x1xf32> to vector<1x128xf32>
    %256 = arith.addf %253, %255 : vector<1x128xf32>
    %c0_156 = arith.constant 0 : index
    %c0_157 = arith.constant 0 : index
    %257 = vector.load %arg11[%c0_156, %c0_157] : memref<1x128xf32, #tpu.memory_space<vmem>>, vector<1x128xf32>
    tpu.vector_store %arg11[%c0_156, %c0_157], %256 {strides = array<i32>} : memref<1x128xf32, #tpu.memory_space<vmem>>, vector<1x128xf32>,
    return
  }
  func.func @transform_0(%arg0: i32) -> (i32, i32) {
    %c0_i32 = arith.constant 0 : i32
    %c0_i32_0 = arith.constant 0 : i32
    return %c0_i32, %arg0 : i32, i32
  }
  func.func @transform_1(%arg0: i32) -> (i32, i32) {
    %c0_i32 = arith.constant 0 : i32
    %c0_i32_0 = arith.constant 0 : i32
    %c0_i32_1 = arith.constant 0 : i32
    return %c0_i32, %c0_i32_0 : i32, i32
  }
  func.func @transform_2(%arg0: i32) -> (i32, i32) {
    %c0_i32 = arith.constant 0 : i32
    %c0_i32_0 = arith.constant 0 : i32
    %c0_i32_1 = arith.constant 0 : i32
    return %c0_i32, %c0_i32_0 : i32, i32
  }
  func.func @transform_3(%arg0: i32) -> (i32, i32, i32) {
    %c0_i32 = arith.constant 0 : i32
    %c0_i32_0 = arith.constant 0 : i32
    %c0_i32_1 = arith.constant 0 : i32
    %c0_i32_2 = arith.constant 0 : i32
    return %c0_i32, %c0_i32_0, %c0_i32_1 : i32, i32, i32
  }
  func.func @transform_4(%arg0: i32) -> (i32, i32, i32) {
    %c0_i32 = arith.constant 0 : i32
    %c0_i32_0 = arith.constant 0 : i32
    %c0_i32_1 = arith.constant 0 : i32
    %c0_i32_2 = arith.constant 0 : i32
    return %c0_i32, %c0_i32_0, %c0_i32_1 : i32, i32, i32
  }
  func.func @transform_5(%arg0: i32) -> (i32, i32, i32) {
    %c0_i32 = arith.constant 0 : i32
    %c0_i32_0 = arith.constant 0 : i32
    %c0_i32_1 = arith.constant 0 : i32
    %c0_i32_2 = arith.constant 0 : i32
    return %c0_i32, %c0_i32_0, %c0_i32_1 : i32, i32, i32
  }
  func.func @transform_6(%arg0: i32) -> (i32, i32, i32) {
    %c0_i32 = arith.constant 0 : i32
    %c0_i32_0 = arith.constant 0 : i32
    %c0_i32_1 = arith.constant 0 : i32
    %c0_i32_2 = arith.constant 0 : i32
    return %c0_i32, %c0_i32_0, %c0_i32_1 : i32, i32, i32
  }
  func.func @transform_7(%arg0: i32) -> (i32, i32, i32) {
    %c0_i32 = arith.constant 0 : i32
    %c0_i32_0 = arith.constant 0 : i32
    %c0_i32_1 = arith.constant 0 : i32
    %c0_i32_2 = arith.constant 0 : i32
    return %c0_i32, %c0_i32_0, %c0_i32_1 : i32, i32, i32
  }
  func.func @transform_8(%arg0: i32) -> (i32, i32, i32) {
    %c0_i32 = arith.constant 0 : i32
    %c0_i32_0 = arith.constant 0 : i32
    %c0_i32_1 = arith.constant 0 : i32
    %c0_i32_2 = arith.constant 0 : i32
    return %c0_i32, %c0_i32_0, %c0_i32_1 : i32, i32, i32
  }
  func.func @transform_9(%arg0: i32) -> (i32, i32) {
    %c0_i32 = arith.constant 0 : i32
    %c0_i32_0 = arith.constant 0 : i32
    %c0_i32_1 = arith.constant 0 : i32
    return %c0_i32, %c0_i32_0 : i32, i32
  }
  func.func @transform_10(%arg0: i32) -> (i32, i32) {
    %c0_i32 = arith.constant 0 : i32
    %c0_i32_0 = arith.constant 0 : i32
    return %c0_i32, %arg0 : i32, i32
  }
}

</mosaic_0001>

<llo_original>
// kernel: tpu_custom_call.1
$region0: #{tpu_custom_call.1}
  #allocation0 [shape = 'u32[]', space=smem, size = 0x4, offset = 0x4, fixed_abs, tag = 'smem constant byte address 0x4 - core index']
  #allocation1 [shape = 'u32[72,128]{1,0:T(1,128)}', space=vmem, size = 0x9000, scoped, tag = 'internal scratch']
  #allocation2 [shape = 'f32[1,1]{1,0:T(1,128)S(1)}', space=vmem, size = 0x200, scoped, tag = 'scoped memory for tpu_custom_call.1']
  %s0 = inlined_call_operand.vmem [shape: f32[1,256], index: 0, kind: input, shape index: {}]
  %s1 = inlined_call_operand.vmem [shape: f32[16,1], index: 1, kind: input, shape index: {}]
  %s2 = inlined_call_operand.vmem [shape: f32[16,1], index: 2, kind: input, shape index: {}]
  %s3 = inlined_call_operand.vmem [shape: f32[6,32,16], index: 3, kind: input, shape index: {}]
  %s4 = inlined_call_operand.vmem [shape: f32[6,32,16], index: 4, kind: input, shape index: {}]
  %s5 = inlined_call_operand.vmem [shape: f32[6,32,1], index: 5, kind: input, shape index: {}]
  %s6 = inlined_call_operand.vmem [shape: f32[6,16,16], index: 6, kind: input, shape index: {}]
  %s7 = inlined_call_operand.vmem [shape: f32[6,16,1], index: 7, kind: input, shape index: {}]
  %s8 = inlined_call_operand.vmem [shape: f32[6,16,1], index: 8, kind: input, shape index: {}]
  %s9 = inlined_call_operand.<no memory space> [shape: f32[1,1], index: 9, kind: input, shape index: {}]
  %s10 = inlined_call_operand.hbm [shape: f32[1,256], index: 10, kind: output, shape index: {}]
  %s11 = sld [smem:[#allocation0]]
  $region73: #{tpu_custom_call.1} parent=0
    _
  %s13 = ssub.s32 1, %s11
  %s14 = scalar_select 0, %s13, %s11
  %v15 = vstv %s9
  %16 = vst [vmem:[#allocation2] sm:$0x1] %v15
  $region1: #{tpu_custom_call.1} parent=0
    #allocation3 [shape = 'u8[1024]{0}', space=vmem, size = 0x400, scoped, tag = 'output window, operand 0']
    #allocation4 [shape = 's32[2]{0}', space=sflag, size = 0x8, scoped, tag = 'scoped memory for tpu_custom_call.1']
    %17 = vsyncpa [#allocation4], 0
    %s18 = scalar_lea.sflag [#allocation4], 1
    %19 = vsyncpa %s18, 0
    loop: start=0, step=1, limit=4
    $region2: #{tpu_custom_call.1} parent=1 // loop_pre_header
      _
    $region3: #{tpu_custom_call.1} parent=1 // loop_header
      %s21 = sphi 0, %s25
      %p22 = scmp.ge.s32.totalorder %s21, 4
      %s31 = sphi 0, %s33
      %s34 = sphi 0, %s31
      %s35 = sphi 0, %s34
      %s51 = sphi 0, %s35
      %s55 = sphi 0, %s55
      %s57 = sphi 0, %s55
      %s58 = sphi 0, %s57
      %s72 = sphi 0, %s58
      %s76 = sphi 0, %s76
      %s78 = sphi 0, %s76
      %s79 = sphi 0, %s78
      %s93 = sphi 0, %s79
      %s97 = sphi 0, %s97
      %s99 = sphi 0, %s97
      %s100 = sphi 0, %s99
      %s114 = sphi 0, %s100
      %s118 = sphi 0, %s118
      %s120 = sphi 0, %s118
      %s121 = sphi 0, %s120
      %s135 = sphi 0, %s121
      %s139 = sphi 0, %s139
      %s141 = sphi 0, %s139
      %s142 = sphi 0, %s141
      %s156 = sphi 0, %s142
      %s160 = sphi 0, %s160
      %s162 = sphi 0, %s160
      %s163 = sphi 0, %s162
      %s177 = sphi 0, %s163
      %s181 = sphi 0, %s181
      %s183 = sphi 0, %s181
      %s184 = sphi 0, %s183
      %s198 = sphi 0, %s184
      %s202 = sphi 0, %s202
      %s204 = sphi 0, %s202
      %s205 = sphi 0, %s204
      %s219 = sphi 0, %s205
      %s223 = sphi 0, %s223
      %s225 = sphi 0, %s223
      %s226 = sphi 0, %s225
      %s240 = sphi 0, %s226
      %s246 = sphi 0, %s248
      %s249 = sphi 0, %s246
      %s250 = sphi 0, %s249
      %s266 = sphi 0, %s250
    $region4: #{tpu_custom_call.1} parent=1 // loop_header_branch
      %24 = sbr.rel (%p22) target = $region8
    $region5: #{tpu_custom_call.1} parent=1 // loop_body
      %s26 = ssub.s32 %s21, 1
      %s27 = ssub.s32 %s21, 2
      %s28 = sadd.s32 %s21, 1
      %s29 = ssub.s32 %s21, %s28
      %p30 = scmp.eq.s32.totalorder %s29, 0
      %s32 = sadd.s32 %s31, 1
      %s33 = scalar_select %p30, %s31, %s32
      %p36 = pneg %p30
      %p37 = scmp.eq.s32.totalorder %s21, 1
      %p38 = por %p36, %p37
      %p39 = scmp.ne.s32.totalorder %s31, %s34
      %p40 = scmp.eq.s32.totalorder %s21, 0
      %p41 = por %p39, %p40
      %p42 = scmp.ne.s32.totalorder %s31, %s34
      %p43 = scmp.eq.s32.totalorder %s26, 1
      %p44 = por %p42, %p43
      %p45 = scmp.ne.s32.totalorder %s34, %s35
      %p46 = scmp.eq.s32.totalorder %s26, 0
      %p47 = por %p45, %p46
      %p48 = scmp.ne.s32.totalorder %s34, %s35
      %p49 = scmp.eq.s32.totalorder %s27, 1
      %p50 = por %p48, %p49
      %p52 = scmp.ne.s32.totalorder %s35, %s51
      %p53 = scmp.eq.s32.totalorder %s27, 0
      %p54 = por %p52, %p53
      %s56 = sadd.s32 %s55, 1
      %p59 = scmp.eq.s32.totalorder %s21, 1
      %p60 = scmp.ne.s32.totalorder %s55, %s57
      %p61 = scmp.eq.s32.totalorder %s21, 0
      %p62 = por %p60, %p61
      %p63 = scmp.ne.s32.totalorder %s55, %s57
      %p64 = scmp.eq.s32.totalorder %s26, 1
      %p65 = por %p63, %p64
      %p66 = scmp.ne.s32.totalorder %s57, %s58
      %p67 = scmp.eq.s32.totalorder %s26, 0
      %p68 = por %p66, %p67
      %p69 = scmp.ne.s32.totalorder %s57, %s58
      %p70 = scmp.eq.s32.totalorder %s27, 1
      %p71 = por %p69, %p70
      %p73 = scmp.ne.s32.totalorder %s58, %s72
      %p74 = scmp.eq.s32.totalorder %s27, 0
      %p75 = por %p73, %p74
      %s77 = sadd.s32 %s76, 1
      %p80 = scmp.eq.s32.totalorder %s21, 1
      %p81 = scmp.ne.s32.totalorder %s76, %s78
      %p82 = scmp.eq.s32.totalorder %s21, 0
      %p83 = por %p81, %p82
      %p84 = scmp.ne.s32.totalorder %s76, %s78
      %p85 = scmp.eq.s32.totalorder %s26, 1
      %p86 = por %p84, %p85
      %p87 = scmp.ne.s32.totalorder %s78, %s79
      %p88 = scmp.eq.s32.totalorder %s26, 0
      %p89 = por %p87, %p88
      %p90 = scmp.ne.s32.totalorder %s78, %s79
      %p91 = scmp.eq.s32.totalorder %s27, 1
      %p92 = por %p90, %p91
      %p94 = scmp.ne.s32.totalorder %s79, %s93
      %p95 = scmp.eq.s32.totalorder %s27, 0
      %p96 = por %p94, %p95
      %s98 = sadd.s32 %s97, 1
      %p101 = scmp.eq.s32.totalorder %s21, 1
      %p102 = scmp.ne.s32.totalorder %s97, %s99
      %p103 = scmp.eq.s32.totalorder %s21, 0
      %p104 = por %p102, %p103
      %p105 = scmp.ne.s32.totalorder %s97, %s99
      %p106 = scmp.eq.s32.totalorder %s26, 1
      %p107 = por %p105, %p106
      %p108 = scmp.ne.s32.totalorder %s99, %s100
      %p109 = scmp.eq.s32.totalorder %s26, 0
      %p110 = por %p108, %p109
      %p111 = scmp.ne.s32.totalorder %s99, %s100
      %p112 = scmp.eq.s32.totalorder %s27, 1
      %p113 = por %p111, %p112
      %p115 = scmp.ne.s32.totalorder %s100, %s114
      %p116 = scmp.eq.s32.totalorder %s27, 0
      %p117 = por %p115, %p116
      %s119 = sadd.s32 %s118, 1
      %p122 = scmp.eq.s32.totalorder %s21, 1
      %p123 = scmp.ne.s32.totalorder %s118, %s120
      %p124 = scmp.eq.s32.totalorder %s21, 0
      %p125 = por %p123, %p124
      %p126 = scmp.ne.s32.totalorder %s118, %s120
      %p127 = scmp.eq.s32.totalorder %s26, 1
      %p128 = por %p126, %p127
      %p129 = scmp.ne.s32.totalorder %s120, %s121
      %p130 = scmp.eq.s32.totalorder %s26, 0
      %p131 = por %p129, %p130
      %p132 = scmp.ne.s32.totalorder %s120, %s121
      %p133 = scmp.eq.s32.totalorder %s27, 1
      %p134 = por %p132, %p133
      %p136 = scmp.ne.s32.totalorder %s121, %s135
      %p137 = scmp.eq.s32.totalorder %s27, 0
      %p138 = por %p136, %p137
      %s140 = sadd.s32 %s139, 1
      %p143 = scmp.eq.s32.totalorder %s21, 1
      %p144 = scmp.ne.s32.totalorder %s139, %s141
      %p145 = scmp.eq.s32.totalorder %s21, 0
      %p146 = por %p144, %p145
      %p147 = scmp.ne.s32.totalorder %s139, %s141
      %p148 = scmp.eq.s32.totalorder %s26, 1
      %p149 = por %p147, %p148
      %p150 = scmp.ne.s32.totalorder %s141, %s142
      %p151 = scmp.eq.s32.totalorder %s26, 0
      %p152 = por %p150, %p151
      %p153 = scmp.ne.s32.totalorder %s141, %s142
      %p154 = scmp.eq.s32.totalorder %s27, 1
      %p155 = por %p153, %p154
      %p157 = scmp.ne.s32.totalorder %s142, %s156
      %p158 = scmp.eq.s32.totalorder %s27, 0
      %p159 = por %p157, %p158
      %s161 = sadd.s32 %s160, 1
      %p164 = scmp.eq.s32.totalorder %s21, 1
      %p165 = scmp.ne.s32.totalorder %s160, %s162
      %p166 = scmp.eq.s32.totalorder %s21, 0
      %p167 = por %p165, %p166
      %p168 = scmp.ne.s32.totalorder %s160, %s162
      %p169 = scmp.eq.s32.totalorder %s26, 1
      %p170 = por %p168, %p169
      %p171 = scmp.ne.s32.totalorder %s162, %s163
      %p172 = scmp.eq.s32.totalorder %s26, 0
      %p173 = por %p171, %p172
      %p174 = scmp.ne.s32.totalorder %s162, %s163
      %p175 = scmp.eq.s32.totalorder %s27, 1
      %p176 = por %p174, %p175
      %p178 = scmp.ne.s32.totalorder %s163, %s177
      %p179 = scmp.eq.s32.totalorder %s27, 0
      %p180 = por %p178, %p179
      %s182 = sadd.s32 %s181, 1
      %p185 = scmp.eq.s32.totalorder %s21, 1
      %p186 = scmp.ne.s32.totalorder %s181, %s183
      %p187 = scmp.eq.s32.totalorder %s21, 0
      %p188 = por %p186, %p187
      %p189 = scmp.ne.s32.totalorder %s181, %s183
      %p190 = scmp.eq.s32.totalorder %s26, 1
      %p191 = por %p189, %p190
      %p192 = scmp.ne.s32.totalorder %s183, %s184
      %p193 = scmp.eq.s32.totalorder %s26, 0
      %p194 = por %p192, %p193
      %p195 = scmp.ne.s32.totalorder %s183, %s184
      %p196 = scmp.eq.s32.totalorder %s27, 1
      %p197 = por %p195, %p196
      %p199 = scmp.ne.s32.totalorder %s184, %s198
      %p200 = scmp.eq.s32.totalorder %s27, 0
      %p201 = por %p199, %p200
      %s203 = sadd.s32 %s202, 1
      %p206 = scmp.eq.s32.totalorder %s21, 1
      %p207 = scmp.ne.s32.totalorder %s202, %s204
      %p208 = scmp.eq.s32.totalorder %s21, 0
      %p209 = por %p207, %p208
      %p210 = scmp.ne.s32.totalorder %s202, %s204
      %p211 = scmp.eq.s32.totalorder %s26, 1
      %p212 = por %p210, %p211
      %p213 = scmp.ne.s32.totalorder %s204, %s205
      %p214 = scmp.eq.s32.totalorder %s26, 0
      %p215 = por %p213, %p214
      %p216 = scmp.ne.s32.totalorder %s204, %s205
      %p217 = scmp.eq.s32.totalorder %s27, 1
      %p218 = por %p216, %p217
      %p220 = scmp.ne.s32.totalorder %s205, %s219
      %p221 = scmp.eq.s32.totalorder %s27, 0
      %p222 = por %p220, %p221
      %s224 = sadd.s32 %s223, 1
      %p227 = scmp.eq.s32.totalorder %s21, 1
      %p228 = scmp.ne.s32.totalorder %s223, %s225
      %p229 = scmp.eq.s32.totalorder %s21, 0
      %p230 = por %p228, %p229
      %p231 = scmp.ne.s32.totalorder %s223, %s225
      %p232 = scmp.eq.s32.totalorder %s26, 1
      %p233 = por %p231, %p232
      %p234 = scmp.ne.s32.totalorder %s225, %s226
      %p235 = scmp.eq.s32.totalorder %s26, 0
      %p236 = por %p234, %p235
      %p237 = scmp.ne.s32.totalorder %s225, %s226
      %p238 = scmp.eq.s32.totalorder %s27, 1
      %p239 = por %p237, %p238
      %p241 = scmp.ne.s32.totalorder %s226, %s240
      %p242 = scmp.eq.s32.totalorder %s27, 0
      %p243 = por %p241, %p242
      %s244 = ssub.s32 %s21, %s28
      %p245 = scmp.eq.s32.totalorder %s244, 0
      %s247 = sadd.s32 %s246, 1
      %s248 = scalar_select %p245, %s246, %s247
      %p251 = pneg %p245
      %p252 = scmp.eq.s32.totalorder %s21, 1
      %p253 = por %p251, %p252
      %p254 = scmp.ne.s32.totalorder %s246, %s249
      %p255 = scmp.eq.s32.totalorder %s21, 0
      %p256 = por %p254, %p255
      %p257 = scmp.ne.s32.totalorder %s246, %s249
      %p258 = scmp.eq.s32.totalorder %s26, 1
      %p259 = por %p257, %p258
      %p260 = scmp.ne.s32.totalorder %s249, %s250
      %p261 = scmp.eq.s32.totalorder %s26, 0
      %p262 = por %p260, %p261
      %p263 = scmp.ne.s32.totalorder %s249, %s250
      %p264 = scmp.eq.s32.totalorder %s27, 1
      %p265 = por %p263, %p264
      %p267 = scmp.ne.s32.totalorder %s250, %s266
      %p268 = scmp.eq.s32.totalorder %s27, 0
      %p269 = por %p267, %p268
      %p270 = scmp.le.s32.totalorder 1, %s21
      %p271 = scmp.lt.s32.totalorder %s21, 3
      %p272 = pnand %p270, %p271
      %p273 = pneg %p272
      // Predicated region
      $region9: #{tpu_custom_call.1} parent=5 // pred_check
        _
      $region10: #{tpu_custom_call.1} parent=5 // pred_check_branch
        %275 = sbr.rel (%p272) target = $region12
      $region11: #{tpu_custom_call.1} parent=5 // pred_region
        %s276 = ssub.s32 %s21, 1
        // Predicated region
        $region13: #{tpu_custom_call.1} parent=11 // pred_check
          %p277 = pneg %p68
        $region14: #{tpu_custom_call.1} parent=11 // pred_check_branch
          %279 = sbr.rel (%p277) target = $region16
        $region15: #{tpu_custom_call.1} parent=11 // pred_region
          _
        $region16: #{tpu_custom_call.1} parent=11 // pred_fallthru
          _
        // Predicated region
        $region17: #{tpu_custom_call.1} parent=11 // pred_check
          %p280 = pneg %p89
        $region18: #{tpu_custom_call.1} parent=11 // pred_check_branch
          %282 = sbr.rel (%p280) target = $region20
        $region19: #{tpu_custom_call.1} parent=11 // pred_region
          _
        $region20: #{tpu_custom_call.1} parent=11 // pred_fallthru
          _
        // Predicated region
        $region21: #{tpu_custom_call.1} parent=11 // pred_check
          %p283 = pneg %p110
        $region22: #{tpu_custom_call.1} parent=11 // pred_check_branch
          %285 = sbr.rel (%p283) target = $region24
        $region23: #{tpu_custom_call.1} parent=11 // pred_region
          _
        $region24: #{tpu_custom_call.1} parent=11 // pred_fallthru
          _
        // Predicated region
        $region25: #{tpu_custom_call.1} parent=11 // pred_check
          %p286 = pneg %p131
        $region26: #{tpu_custom_call.1} parent=11 // pred_check_branch
          %288 = sbr.rel (%p286) target = $region28
        $region27: #{tpu_custom_call.1} parent=11 // pred_region
          _
        $region28: #{tpu_custom_call.1} parent=11 // pred_fallthru
          _
        // Predicated region
        $region29: #{tpu_custom_call.1} parent=11 // pred_check
          %p289 = pneg %p152
        $region30: #{tpu_custom_call.1} parent=11 // pred_check_branch
          %291 = sbr.rel (%p289) target = $region32
        $region31: #{tpu_custom_call.1} parent=11 // pred_region
          _
        $region32: #{tpu_custom_call.1} parent=11 // pred_fallthru
          _
        // Predicated region
        $region33: #{tpu_custom_call.1} parent=11 // pred_check
          %p292 = pneg %p173
        $region34: #{tpu_custom_call.1} parent=11 // pred_check_branch
          %294 = sbr.rel (%p292) target = $region36
        $region35: #{tpu_custom_call.1} parent=11 // pred_region
          _
        $region36: #{tpu_custom_call.1} parent=11 // pred_fallthru
          _
        // Predicated region
        $region37: #{tpu_custom_call.1} parent=11 // pred_check
          %p295 = pneg %p194
        $region38: #{tpu_custom_call.1} parent=11 // pred_check_branch
          %297 = sbr.rel (%p295) target = $region40
        $region39: #{tpu_custom_call.1} parent=11 // pred_region
          _
        $region40: #{tpu_custom_call.1} parent=11 // pred_fallthru
          _
        // Predicated region
        $region41: #{tpu_custom_call.1} parent=11 // pred_check
          %p298 = pneg %p215
        $region42: #{tpu_custom_call.1} parent=11 // pred_check_branch
          %300 = sbr.rel (%p298) target = $region44
        $region43: #{tpu_custom_call.1} parent=11 // pred_region
          _
        $region44: #{tpu_custom_call.1} parent=11 // pred_fallthru
          _
        // Predicated region
        $region45: #{tpu_custom_call.1} parent=11 // pred_check
          %p301 = pneg %p236
        $region46: #{tpu_custom_call.1} parent=11 // pred_check_branch
          %303 = sbr.rel (%p301) target = $region48
        $region47: #{tpu_custom_call.1} parent=11 // pred_region
          _
        $region48: #{tpu_custom_call.1} parent=11 // pred_fallthru
          _
      $region12: #{tpu_custom_call.1} parent=5 // pred_fallthru
        _
      %p304 = scmp.lt.s32.totalorder %s21, 2
      // Predicated region
      $region49: #{tpu_custom_call.1} parent=5 // pred_check
        %p305 = pneg %p304
      $region50: #{tpu_custom_call.1} parent=5 // pred_check_branch
        %307 = sbr.rel (%p305) target = $region52
      $region51: #{tpu_custom_call.1} parent=5 // pred_region
        // Predicated region
        $region53: #{tpu_custom_call.1} parent=51 // pred_check
          %p308 = pneg %p41
        $region54: #{tpu_custom_call.1} parent=51 // pred_check_branch
          %310 = sbr.rel (%p308) target = $region56
        $region55: #{tpu_custom_call.1} parent=51 // pred_region
          %p311 = scmp.lt.s32.totalorder %s21, 1
          %s312 = scalar_select %p311, %s21, 1
          %s313 = scalar_lea.vmem %s0, %s312
        $region56: #{tpu_custom_call.1} parent=51 // pred_fallthru
          _
      $region52: #{tpu_custom_call.1} parent=5 // pred_fallthru
        _
      %p314 = scmp.le.s32.totalorder 1, %s21
      %p315 = scmp.lt.s32.totalorder %s21, 3
      %p316 = pnand %p314, %p315
      %p317 = pneg %p316
      // Predicated region
      $region57: #{tpu_custom_call.1} parent=5 // pred_check
        _
      $region58: #{tpu_custom_call.1} parent=5 // pred_check_branch
        %319 = sbr.rel (%p316) target = $region60
      $region59: #{tpu_custom_call.1} parent=5 // pred_region
        %s320 = ssub.s32 %s21, 1
        %p321 = scmp.lt.s32.totalorder %s26, 1
        %s322 = scalar_select %p321, %s26, 1
        %s323 = scalar_lea.vmem %s0, %s322
        %p324 = pneg %p47
        %p325 = pneg %p44
        %p326 = pneg %p68
        %p327 = pneg %p65
        %p328 = pneg %p89
        %p329 = pneg %p86
        %p330 = pneg %p110
        %p331 = pneg %p107
        %p332 = pneg %p131
        %p333 = pneg %p128
        %p334 = pneg %p152
        %p335 = pneg %p149
        %p336 = pneg %p173
        %p337 = pneg %p170
        %p338 = pneg %p194
        %p339 = pneg %p191
        %p340 = pneg %p215
        %p341 = pneg %p212
        %p342 = pneg %p236
        %p343 = pneg %p233
        %p344 = pneg %p262
        %p345 = pneg %p259
        %s346 = sand.u32 %s249, 1
        %s347 = scalar_lea.sflag [#allocation4], %s346
        %s348 = sand.u32 %s249, 1
        %s349 = scalar_lea.vmem [#allocation3], %s348
        %p350 = scmp.lt.s32.totalorder %s26, 1
        %s351 = scalar_select %p350, %s26, 1
        %s352 = scalar_lea.vmem %s0, %s351
        %v353 = vld [vmem:[%s352] sm:$0x1]
        %v354 = vld [vmem:[%s1] sm:$0xff]
        %v355 = vld [vmem:[%s1 + $0x8] sm:$0xff]
        %357 = vset.pattern.permute.xlu0 0
        %358 = vperm.xlu0 %357, %v354
        %v359 = vpop.permute.xlu0 %358
        %362 = vset.pattern.permute.xlu0 0
        %363 = vperm.xlu0 %362, %v355
        %v364 = vpop.permute.xlu0 %363
        %v367 = vperm.slane %v353, 0
        %v369 = vmul.f32 %v359, %v367
        %v370 = vmul.f32 %v364, %v367
        %v371 = vld [vmem:[%s2] sm:$0xff]
        %v372 = vld [vmem:[%s2 + $0x8] sm:$0xff]
        %374 = vset.pattern.permute.xlu0 0
        %375 = vperm.xlu0 %374, %v371
        %v376 = vpop.permute.xlu0 %375
        %379 = vset.pattern.permute.xlu0 0
        %380 = vperm.xlu0 %379, %v372
        %v381 = vpop.permute.xlu0 %380
        %v383 = vadd.f32 %v369, %v376
        %v384 = vadd.f32 %v370, %v381
        %v385 = vlaneseq
        %v386 = vand.u32 %v385, 127
        %vm387 = vcmp.lt.s32.totalorder %v386, 0
        %v388 = vsub.s32 0, %v386
        %v389 = vsel %vm387, %v388, %v386
        %v390 = vshrl.u32 %v389, 6
        %v391 = vand.u32 %v389, 63
        %v392 = vsub.s32 0, %v391
        %v393 = vsel %vm387, %v392, %v391
        %vm394 = vcmp.ne.s32.totalorder %v393, 0
        %vm395 = vcmp.lt.s32.totalorder %v393, 0
        %vm396 = vmand %vm395, %vm394
        %v397 = vadd.s32 %v393, 64
        %v398 = vsel %vm396, %v397, %v393
        %vm399 = vcmp.ge.s32.totalorder %v398, 1
        %vm400 = vcmp.ge.s32.totalorder %v398, 2
        %vm401 = vcmp.ge.s32.totalorder %v398, 4
        %402 = vrot.lane.b32.xlu0 %v383, 1
        %v403 = vpop.permute.xlu0 %402
        %404 = vrot.lane.b32.xlu0 %v384, 1
        %v405 = vpop.permute.xlu0 %404
        %v406 = vsel %vm399, %v403, 0.0
        %v407 = vsel %vm399, %v405, 0.0
        %v408 = vld [vmem:[%s3] sm:$0xff]
        %v409 = vld [vmem:[%s3 + $0x8] sm:$0xff]
        %v410 = vld [vmem:[%s3 + $0x10] sm:$0xff]
        %v411 = vld [vmem:[%s3 + $0x18] sm:$0xff]
        %v412 = vld [vmem:[%s4] sm:$0xff]
        %v413 = vld [vmem:[%s4 + $0x8] sm:$0xff]
        %v414 = vld [vmem:[%s4 + $0x10] sm:$0xff]
        %v415 = vld [vmem:[%s4 + $0x18] sm:$0xff]
        %vm416 = vcmask 130048
        %v418 = vsel %vm416, %v412, 0
        %v421 = vsel %vm416, %v413, 0
        %v424 = vsel %vm416, %v414, 0
        %v427 = vsel %vm416, %v415, 0
        %429 = vmatpush.msra.mxu0 0.0
        %430 = vmatpush.msra.mxu0 0.0
        %431 = vmatpush.msra.mxu0 0.0
        %432 = vmatpush.msra.mxu0 0.0
        %433 = vmatpush.msra.mxu0 0.0
        %434 = vmatpush.msra.mxu0 0.0
        %435 = vmatpush.msra.mxu0 0.0
        %436 = vmatpush.msra.mxu0 0.0
        %437 = vmatpush.msra.mxu0 0.0
        %438 = vmatpush.msra.mxu0 0.0
        %439 = vmatpush.msra.mxu0 0.0
        %440 = vmatpush.msra.mxu0 0.0
        %441 = vmatpush.msra.mxu0 0.0
        %442 = vmatpush.msra.mxu0 0.0
        %443 = vmatpush.msra.mxu0 %v384
        %444 = vmatpush.msra.mxu0 %v383
        %445 = vmatmul.f32.gmra.mxu0 %v418
        %v446 = vpop.f32.mrf.mxu0
        %v447 = vadd.f32 0.0, %v446
        %448 = vmatmul.f32.gmra.mxu0 %v421
        %v449 = vpop.f32.mrf.mxu0
        %v450 = vadd.f32 0.0, %v449
        %451 = vmatmul.f32.gmra.mxu0 %v424
        %v452 = vpop.f32.mrf.mxu0
        %v453 = vadd.f32 0.0, %v452
        %454 = vmatmul.f32.gmra.mxu0 %v427
        %v455 = vpop.f32.mrf.mxu0
        %v456 = vadd.f32 0.0, %v455
        %457 = vdwg.mxu0
        %v459 = vsel %vm416, %v408, 0
        %v462 = vsel %vm416, %v409, 0
        %v465 = vsel %vm416, %v410, 0
        %v468 = vsel %vm416, %v411, 0
        %470 = vmatpush.msra.mxu0 0.0
        %471 = vmatpush.msra.mxu0 0.0
        %472 = vmatpush.msra.mxu0 0.0
        %473 = vmatpush.msra.mxu0 0.0
        %474 = vmatpush.msra.mxu0 0.0
        %475 = vmatpush.msra.mxu0 0.0
        %476 = vmatpush.msra.mxu0 0.0
        %477 = vmatpush.msra.mxu0 0.0
        %478 = vmatpush.msra.mxu0 0.0
        %479 = vmatpush.msra.mxu0 0.0
        %480 = vmatpush.msra.mxu0 0.0
        %481 = vmatpush.msra.mxu0 0.0
        %482 = vmatpush.msra.mxu0 0.0
        %483 = vmatpush.msra.mxu0 0.0
        %484 = vmatpush.msra.mxu0 %v407
        %485 = vmatpush.msra.mxu0 %v406
        %486 = vmatmul.f32.gmra.mxu0 %v459
        %v487 = vpop.f32.mrf.mxu0
        %v488 = vadd.f32 %v447, %v487
        %489 = vmatmul.f32.gmra.mxu0 %v462
        %v490 = vpop.f32.mrf.mxu0
        %v491 = vadd.f32 %v450, %v490
        %492 = vmatmul.f32.gmra.mxu0 %v465
        %v493 = vpop.f32.mrf.mxu0
        %v494 = vadd.f32 %v453, %v493
        %495 = vmatmul.f32.gmra.mxu0 %v468
        %v496 = vpop.f32.mrf.mxu0
        %v497 = vadd.f32 %v456, %v496
        %498 = vdwg.mxu0
        %v499 = vld [vmem:[%s5] sm:$0xff]
        %v500 = vld [vmem:[%s5 + $0x8] sm:$0xff]
        %v501 = vld [vmem:[%s5 + $0x10] sm:$0xff]
        %v502 = vld [vmem:[%s5 + $0x18] sm:$0xff]
        %504 = vset.pattern.permute.xlu0 0
        %505 = vperm.xlu0 %504, %v499
        %v506 = vpop.permute.xlu0 %505
        %509 = vset.pattern.permute.xlu0 0
        %510 = vperm.xlu0 %509, %v500
        %v511 = vpop.permute.xlu0 %510
        %514 = vset.pattern.permute.xlu0 0
        %515 = vperm.xlu0 %514, %v501
        %v516 = vpop.permute.xlu0 %515
        %519 = vset.pattern.permute.xlu0 0
        %520 = vperm.xlu0 %519, %v502
        %v521 = vpop.permute.xlu0 %520
        %v523 = vadd.f32 %v488, %v506
        %v524 = vadd.f32 %v491, %v511
        %v525 = vadd.f32 %v494, %v516
        %v526 = vadd.f32 %v497, %v521
        %v527 = vtanh.pop %v523
        %v528 = vtanh.pop %v524
        %v529 = vmul.f32 %v525, 0.5
        %v530 = vmul.f32 %v526, 0.5
        %v531 = vtanh.pop %v529
        %v532 = vtanh.pop %v530
        %v533 = vmul.f32 %v531, 0.5
        %v534 = vmul.f32 %v532, 0.5
        %v535 = vadd.f32 %v533, 0.5
        %v536 = vadd.f32 %v534, 0.5
        %v537 = vmul.f32 %v527, %v535
        %v538 = vmul.f32 %v528, %v536
        %v539 = vld [vmem:[%s6] sm:$0xff]
        %v540 = vld [vmem:[%s6 + $0x8] sm:$0xff]
        %v542 = vsel %vm416, %v539, 0
        %v545 = vsel %vm416, %v540, 0
        %547 = vmatpush.msra.mxu0 0.0
        %548 = vmatpush.msra.mxu0 0.0
        %549 = vmatpush.msra.mxu0 0.0
        %550 = vmatpush.msra.mxu0 0.0
        %551 = vmatpush.msra.mxu0 0.0
        %552 = vmatpush.msra.mxu0 0.0
        %553 = vmatpush.msra.mxu0 0.0
        %554 = vmatpush.msra.mxu0 0.0
        %555 = vmatpush.msra.mxu0 0.0
        %556 = vmatpush.msra.mxu0 0.0
        %557 = vmatpush.msra.mxu0 0.0
        %558 = vmatpush.msra.mxu0 0.0
        %559 = vmatpush.msra.mxu0 0.0
        %560 = vmatpush.msra.mxu0 0.0
        %561 = vmatpush.msra.mxu0 %v538
        %562 = vmatpush.msra.mxu0 %v537
        %563 = vmatmul.f32.gmra.mxu0 %v542
        %v564 = vpop.f32.mrf.mxu0
        %v565 = vadd.f32 0.0, %v564
        %566 = vmatmul.f32.gmra.mxu0 %v545
        %v567 = vpop.f32.mrf.mxu0
        %v568 = vadd.f32 0.0, %v567
        %569 = vdwg.mxu0
        %v570 = vadd.f32 %v383, %v565
        %v571 = vadd.f32 %v384, %v568
        %v572 = vld [vmem:[%s7] sm:$0xff]
        %v573 = vld [vmem:[%s7 + $0x8] sm:$0xff]
        %575 = vset.pattern.permute.xlu0 0
        %576 = vperm.xlu0 %575, %v572
        %v577 = vpop.permute.xlu0 %576
        %580 = vset.pattern.permute.xlu0 0
        %581 = vperm.xlu0 %580, %v573
        %v582 = vpop.permute.xlu0 %581
        %v584 = vadd.f32 %v570, %v577
        %v585 = vadd.f32 %v571, %v582
        %v586 = vld [vmem:[%s8] sm:$0xff]
        %v587 = vld [vmem:[%s8 + $0x8] sm:$0xff]
        %589 = vset.pattern.permute.xlu0 0
        %590 = vperm.xlu0 %589, %v586
        %v591 = vpop.permute.xlu0 %590
        %594 = vset.pattern.permute.xlu0 0
        %595 = vperm.xlu0 %594, %v587
        %v596 = vpop.permute.xlu0 %595
        %v598 = vmul.f32 %v537, %v591
        %v599 = vmul.f32 %v538, %v596
        %v600 = vadd.f32 %v598, 0.0
        %v601 = vadd.f32 %v599, 0.0
        %602 = vrot.lane.b32.xlu0 %v584, 2
        %v603 = vpop.permute.xlu0 %602
        %604 = vrot.lane.b32.xlu0 %v585, 2
        %v605 = vpop.permute.xlu0 %604
        %v606 = vsel %vm400, %v603, 0.0
        %v607 = vsel %vm400, %v605, 0.0
        %s608 = scalar_lea.vmem %s3, 32
        %v609 = vld [vmem:[%s608] sm:$0xff]
        %v610 = vld [vmem:[%s608 + $0x8] sm:$0xff]
        %v611 = vld [vmem:[%s608 + $0x10] sm:$0xff]
        %v612 = vld [vmem:[%s608 + $0x18] sm:$0xff]
        %s613 = scalar_lea.vmem %s4, 32
        %v614 = vld [vmem:[%s613] sm:$0xff]
        %v615 = vld [vmem:[%s613 + $0x8] sm:$0xff]
        %v616 = vld [vmem:[%s613 + $0x10] sm:$0xff]
        %v617 = vld [vmem:[%s613 + $0x18] sm:$0xff]
        %v619 = vsel %vm416, %v614, 0
        %v622 = vsel %vm416, %v615, 0
        %v625 = vsel %vm416, %v616, 0
        %v628 = vsel %vm416, %v617, 0
        %630 = vmatpush.msra.mxu0 0.0
        %631 = vmatpush.msra.mxu0 0.0
        %632 = vmatpush.msra.mxu0 0.0
        %633 = vmatpush.msra.mxu0 0.0
        %634 = vmatpush.msra.mxu0 0.0
        %635 = vmatpush.msra.mxu0 0.0
        %636 = vmatpush.msra.mxu0 0.0
        %637 = vmatpush.msra.mxu0 0.0
        %638 = vmatpush.msra.mxu0 0.0
        %639 = vmatpush.msra.mxu0 0.0
        %640 = vmatpush.msra.mxu0 0.0
        %641 = vmatpush.msra.mxu0 0.0
        %642 = vmatpush.msra.mxu0 0.0
        %643 = vmatpush.msra.mxu0 0.0
        %644 = vmatpush.msra.mxu0 %v585
        %645 = vmatpush.msra.mxu0 %v584
        %646 = vmatmul.f32.gmra.mxu0 %v619
        %v647 = vpop.f32.mrf.mxu0
        %v648 = vadd.f32 0.0, %v647
        %649 = vmatmul.f32.gmra.mxu0 %v622
        %v650 = vpop.f32.mrf.mxu0
        %v651 = vadd.f32 0.0, %v650
        %652 = vmatmul.f32.gmra.mxu0 %v625
        %v653 = vpop.f32.mrf.mxu0
        %v654 = vadd.f32 0.0, %v653
        %655 = vmatmul.f32.gmra.mxu0 %v628
        %v656 = vpop.f32.mrf.mxu0
        %v657 = vadd.f32 0.0, %v656
        %658 = vdwg.mxu0
        %v660 = vsel %vm416, %v609, 0
        %v663 = vsel %vm416, %v610, 0
        %v666 = vsel %vm416, %v611, 0
        %v669 = vsel %vm416, %v612, 0
        %671 = vmatpush.msra.mxu0 0.0
        %672 = vmatpush.msra.mxu0 0.0
        %673 = vmatpush.msra.mxu0 0.0
        %674 = vmatpush.msra.mxu0 0.0
        %675 = vmatpush.msra.mxu0 0.0
        %676 = vmatpush.msra.mxu0 0.0
        %677 = vmatpush.msra.mxu0 0.0
        %678 = vmatpush.msra.mxu0 0.0
        %679 = vmatpush.msra.mxu0 0.0
        %680 = vmatpush.msra.mxu0 0.0
        %681 = vmatpush.msra.mxu0 0.0
        %682 = vmatpush.msra.mxu0 0.0
        %683 = vmatpush.msra.mxu0 0.0
        %684 = vmatpush.msra.mxu0 0.0
        %685 = vmatpush.msra.mxu0 %v607
        %686 = vmatpush.msra.mxu0 %v606
        %687 = vmatmul.f32.gmra.mxu0 %v660
        %v688 = vpop.f32.mrf.mxu0
        %v689 = vadd.f32 %v648, %v688
        %690 = vmatmul.f32.gmra.mxu0 %v663
        %v691 = vpop.f32.mrf.mxu0
        %v692 = vadd.f32 %v651, %v691
        %693 = vmatmul.f32.gmra.mxu0 %v666
        %v694 = vpop.f32.mrf.mxu0
        %v695 = vadd.f32 %v654, %v694
        %696 = vmatmul.f32.gmra.mxu0 %v669
        %v697 = vpop.f32.mrf.mxu0
        %v698 = vadd.f32 %v657, %v697
        %699 = vdwg.mxu0
        %s700 = scalar_lea.vmem %s5, 32
        %v701 = vld [vmem:[%s700] sm:$0xff]
        %v702 = vld [vmem:[%s700 + $0x8] sm:$0xff]
        %v703 = vld [vmem:[%s700 + $0x10] sm:$0xff]
        %v704 = vld [vmem:[%s700 + $0x18] sm:$0xff]
        %706 = vset.pattern.permute.xlu0 0
        %707 = vperm.xlu0 %706, %v701
        %v708 = vpop.permute.xlu0 %707
        %711 = vset.pattern.permute.xlu0 0
        %712 = vperm.xlu0 %711, %v702
        %v713 = vpop.permute.xlu0 %712
        %716 = vset.pattern.permute.xlu0 0
        %717 = vperm.xlu0 %716, %v703
        %v718 = vpop.permute.xlu0 %717
        %721 = vset.pattern.permute.xlu0 0
        %722 = vperm.xlu0 %721, %v704
        %v723 = vpop.permute.xlu0 %722
        %v725 = vadd.f32 %v689, %v708
        %v726 = vadd.f32 %v692, %v713
        %v727 = vadd.f32 %v695, %v718
        %v728 = vadd.f32 %v698, %v723
        %v729 = vtanh.pop %v725
        %v730 = vtanh.pop %v726
        %v731 = vmul.f32 %v727, 0.5
        %v732 = vmul.f32 %v728, 0.5
        %v733 = vtanh.pop %v731
        %v734 = vtanh.pop %v732
        %v735 = vmul.f32 %v733, 0.5
        %v736 = vmul.f32 %v734, 0.5
        %v737 = vadd.f32 %v735, 0.5
        %v738 = vadd.f32 %v736, 0.5
        %v739 = vmul.f32 %v729, %v737
        %v740 = vmul.f32 %v730, %v738
        %s741 = scalar_lea.vmem %s6, 16
        %v742 = vld [vmem:[%s741] sm:$0xff]
        %v743 = vld [vmem:[%s741 + $0x8] sm:$0xff]
        %v745 = vsel %vm416, %v742, 0
        %v748 = vsel %vm416, %v743, 0
        %750 = vmatpush.msra.mxu0 0.0
        %751 = vmatpush.msra.mxu0 0.0
        %752 = vmatpush.msra.mxu0 0.0
        %753 = vmatpush.msra.mxu0 0.0
        %754 = vmatpush.msra.mxu0 0.0
        %755 = vmatpush.msra.mxu0 0.0
        %756 = vmatpush.msra.mxu0 0.0
        %757 = vmatpush.msra.mxu0 0.0
        %758 = vmatpush.msra.mxu0 0.0
        %759 = vmatpush.msra.mxu0 0.0
        %760 = vmatpush.msra.mxu0 0.0
        %761 = vmatpush.msra.mxu0 0.0
        %762 = vmatpush.msra.mxu0 0.0
        %763 = vmatpush.msra.mxu0 0.0
        %764 = vmatpush.msra.mxu0 %v740
        %765 = vmatpush.msra.mxu0 %v739
        %766 = vmatmul.f32.gmra.mxu0 %v745
        %v767 = vpop.f32.mrf.mxu0
        %v768 = vadd.f32 0.0, %v767
        %769 = vmatmul.f32.gmra.mxu0 %v748
        %v770 = vpop.f32.mrf.mxu0
        %v771 = vadd.f32 0.0, %v770
        %772 = vdwg.mxu0
        %v773 = vadd.f32 %v584, %v768
        %v774 = vadd.f32 %v585, %v771
        %s775 = scalar_lea.vmem %s7, 16
        %v776 = vld [vmem:[%s775] sm:$0xff]
        %v777 = vld [vmem:[%s775 + $0x8] sm:$0xff]
        %779 = vset.pattern.permute.xlu0 0
        %780 = vperm.xlu0 %779, %v776
        %v781 = vpop.permute.xlu0 %780
        %784 = vset.pattern.permute.xlu0 0
        %785 = vperm.xlu0 %784, %v777
        %v786 = vpop.permute.xlu0 %785
        %v788 = vadd.f32 %v773, %v781
        %v789 = vadd.f32 %v774, %v786
        %s790 = scalar_lea.vmem %s8, 16
        %v791 = vld [vmem:[%s790] sm:$0xff]
        %v792 = vld [vmem:[%s790 + $0x8] sm:$0xff]
        %794 = vset.pattern.permute.xlu0 0
        %795 = vperm.xlu0 %794, %v791
        %v796 = vpop.permute.xlu0 %795
        %799 = vset.pattern.permute.xlu0 0
        %800 = vperm.xlu0 %799, %v792
        %v801 = vpop.permute.xlu0 %800
        %v803 = vmul.f32 %v739, %v796
        %v804 = vmul.f32 %v740, %v801
        %v805 = vadd.f32 %v600, %v803
        %v806 = vadd.f32 %v601, %v804
        %807 = vrot.lane.b32.xlu0 %v788, 4
        %v808 = vpop.permute.xlu0 %807
        %809 = vrot.lane.b32.xlu0 %v789, 4
        %v810 = vpop.permute.xlu0 %809
        %v811 = vsel %vm401, %v808, 0.0
        %v812 = vsel %vm401, %v810, 0.0
        %s813 = scalar_lea.vmem %s3, 64
        %v814 = vld [vmem:[%s813] sm:$0xff]
        %v815 = vld [vmem:[%s813 + $0x8] sm:$0xff]
        %v816 = vld [vmem:[%s813 + $0x10] sm:$0xff]
        %v817 = vld [vmem:[%s813 + $0x18] sm:$0xff]
        %s818 = scalar_lea.vmem %s4, 64
        %v819 = vld [vmem:[%s818] sm:$0xff]
        %v820 = vld [vmem:[%s818 + $0x8] sm:$0xff]
        %v821 = vld [vmem:[%s818 + $0x10] sm:$0xff]
        %v822 = vld [vmem:[%s818 + $0x18] sm:$0xff]
        %v824 = vsel %vm416, %v819, 0
        %v827 = vsel %vm416, %v820, 0
        %v830 = vsel %vm416, %v821, 0
        %v833 = vsel %vm416, %v822, 0
        %835 = vmatpush.msra.mxu0 0.0
        %836 = vmatpush.msra.mxu0 0.0
        %837 = vmatpush.msra.mxu0 0.0
        %838 = vmatpush.msra.mxu0 0.0
        %839 = vmatpush.msra.mxu0 0.0
        %840 = vmatpush.msra.mxu0 0.0
        %841 = vmatpush.msra.mxu0 0.0
        %842 = vmatpush.msra.mxu0 0.0
        %843 = vmatpush.msra.mxu0 0.0
        %844 = vmatpush.msra.mxu0 0.0
        %845 = vmatpush.msra.mxu0 0.0
        %846 = vmatpush.msra.mxu0 0.0
        %847 = vmatpush.msra.mxu0 0.0
        %848 = vmatpush.msra.mxu0 0.0
        %849 = vmatpush.msra.mxu0 %v789
        %850 = vmatpush.msra.mxu0 %v788
        %851 = vmatmul.f32.gmra.mxu0 %v824
        %v852 = vpop.f32.mrf.mxu0
        %v853 = vadd.f32 0.0, %v852
        %854 = vmatmul.f32.gmra.mxu0 %v827
        %v855 = vpop.f32.mrf.mxu0
        %v856 = vadd.f32 0.0, %v855
        %857 = vmatmul.f32.gmra.mxu0 %v830
        %v858 = vpop.f32.mrf.mxu0
        %v859 = vadd.f32 0.0, %v858
        %860 = vmatmul.f32.gmra.mxu0 %v833
        %v861 = vpop.f32.mrf.mxu0
        %v862 = vadd.f32 0.0, %v861
        %863 = vdwg.mxu0
        %v865 = vsel %vm416, %v814, 0
        %v868 = vsel %vm416, %v815, 0
        %v871 = vsel %vm416, %v816, 0
        %v874 = vsel %vm416, %v817, 0
        %876 = vmatpush.msra.mxu0 0.0
        %877 = vmatpush.msra.mxu0 0.0
        %878 = vmatpush.msra.mxu0 0.0
        %879 = vmatpush.msra.mxu0 0.0
        %880 = vmatpush.msra.mxu0 0.0
        %881 = vmatpush.msra.mxu0 0.0
        %882 = vmatpush.msra.mxu0 0.0
        %883 = vmatpush.msra.mxu0 0.0
        %884 = vmatpush.msra.mxu0 0.0
        %885 = vmatpush.msra.mxu0 0.0
        %886 = vmatpush.msra.mxu0 0.0
        %887 = vmatpush.msra.mxu0 0.0
        %888 = vmatpush.msra.mxu0 0.0
        %889 = vmatpush.msra.mxu0 0.0
        %890 = vmatpush.msra.mxu0 %v812
        %891 = vmatpush.msra.mxu0 %v811
        %892 = vmatmul.f32.gmra.mxu0 %v865
        %v893 = vpop.f32.mrf.mxu0
        %v894 = vadd.f32 %v853, %v893
        %895 = vmatmul.f32.gmra.mxu0 %v868
        %v896 = vpop.f32.mrf.mxu0
        %v897 = vadd.f32 %v856, %v896
        %898 = vmatmul.f32.gmra.mxu0 %v871
        %v899 = vpop.f32.mrf.mxu0
        %v900 = vadd.f32 %v859, %v899
        %901 = vmatmul.f32.gmra.mxu0 %v874
        %v902 = vpop.f32.mrf.mxu0
        %v903 = vadd.f32 %v862, %v902
        %904 = vdwg.mxu0
        %s905 = scalar_lea.vmem %s5, 64
        %v906 = vld [vmem:[%s905] sm:$0xff]
        %v907 = vld [vmem:[%s905 + $0x8] sm:$0xff]
        %v908 = vld [vmem:[%s905 + $0x10] sm:$0xff]
        %v909 = vld [vmem:[%s905 + $0x18] sm:$0xff]
        %911 = vset.pattern.permute.xlu0 0
        %912 = vperm.xlu0 %911, %v906
        %v913 = vpop.permute.xlu0 %912
        %916 = vset.pattern.permute.xlu0 0
        %917 = vperm.xlu0 %916, %v907
        %v918 = vpop.permute.xlu0 %917
        %921 = vset.pattern.permute.xlu0 0
        %922 = vperm.xlu0 %921, %v908
        %v923 = vpop.permute.xlu0 %922
        %926 = vset.pattern.permute.xlu0 0
        %927 = vperm.xlu0 %926, %v909
        %v928 = vpop.permute.xlu0 %927
        %v930 = vadd.f32 %v894, %v913
        %v931 = vadd.f32 %v897, %v918
        %v932 = vadd.f32 %v900, %v923
        %v933 = vadd.f32 %v903, %v928
        %v934 = vtanh.pop %v930
        %v935 = vtanh.pop %v931
        %v936 = vmul.f32 %v932, 0.5
        %v937 = vmul.f32 %v933, 0.5
        %v938 = vtanh.pop %v936
        %v939 = vtanh.pop %v937
        %v940 = vmul.f32 %v938, 0.5
        %v941 = vmul.f32 %v939, 0.5
        %v942 = vadd.f32 %v940, 0.5
        %v943 = vadd.f32 %v941, 0.5
        %v944 = vmul.f32 %v934, %v942
        %v945 = vmul.f32 %v935, %v943
        %s946 = scalar_lea.vmem %s6, 32
        %v947 = vld [vmem:[%s946] sm:$0xff]
        %v948 = vld [vmem:[%s946 + $0x8] sm:$0xff]
        %v950 = vsel %vm416, %v947, 0
        %v953 = vsel %vm416, %v948, 0
        %955 = vmatpush.msra.mxu0 0.0
        %956 = vmatpush.msra.mxu0 0.0
        %957 = vmatpush.msra.mxu0 0.0
        %958 = vmatpush.msra.mxu0 0.0
        %959 = vmatpush.msra.mxu0 0.0
        %960 = vmatpush.msra.mxu0 0.0
        %961 = vmatpush.msra.mxu0 0.0
        %962 = vmatpush.msra.mxu0 0.0
        %963 = vmatpush.msra.mxu0 0.0
        %964 = vmatpush.msra.mxu0 0.0
        %965 = vmatpush.msra.mxu0 0.0
        %966 = vmatpush.msra.mxu0 0.0
        %967 = vmatpush.msra.mxu0 0.0
        %968 = vmatpush.msra.mxu0 0.0
        %969 = vmatpush.msra.mxu0 %v945
        %970 = vmatpush.msra.mxu0 %v944
        %971 = vmatmul.f32.gmra.mxu0 %v950
        %v972 = vpop.f32.mrf.mxu0
        %v973 = vadd.f32 0.0, %v972
        %974 = vmatmul.f32.gmra.mxu0 %v953
        %v975 = vpop.f32.mrf.mxu0
        %v976 = vadd.f32 0.0, %v975
        %977 = vdwg.mxu0
        %v978 = vadd.f32 %v788, %v973
        %v979 = vadd.f32 %v789, %v976
        %s980 = scalar_lea.vmem %s7, 32
        %v981 = vld [vmem:[%s980] sm:$0xff]
        %v982 = vld [vmem:[%s980 + $0x8] sm:$0xff]
        %984 = vset.pattern.permute.xlu0 0
        %985 = vperm.xlu0 %984, %v981
        %v986 = vpop.permute.xlu0 %985
        %989 = vset.pattern.permute.xlu0 0
        %990 = vperm.xlu0 %989, %v982
        %v991 = vpop.permute.xlu0 %990
        %v993 = vadd.f32 %v978, %v986
        %v994 = vadd.f32 %v979, %v991
        %s995 = scalar_lea.vmem %s8, 32
        %v996 = vld [vmem:[%s995] sm:$0xff]
        %v997 = vld [vmem:[%s995 + $0x8] sm:$0xff]
        %999 = vset.pattern.permute.xlu0 0
        %1000 = vperm.xlu0 %999, %v996
        %v1001 = vpop.permute.xlu0 %1000
        %1004 = vset.pattern.permute.xlu0 0
        %1005 = vperm.xlu0 %1004, %v997
        %v1006 = vpop.permute.xlu0 %1005
        %v1008 = vmul.f32 %v944, %v1001
        %v1009 = vmul.f32 %v945, %v1006
        %v1010 = vadd.f32 %v805, %v1008
        %v1011 = vadd.f32 %v806, %v1009
        %1012 = vrot.lane.b32.xlu0 %v993, 1
        %v1013 = vpop.permute.xlu0 %1012
        %1014 = vrot.lane.b32.xlu0 %v994, 1
        %v1015 = vpop.permute.xlu0 %1014
        %v1016 = vsel %vm399, %v1013, 0.0
        %v1017 = vsel %vm399, %v1015, 0.0
        %s1018 = scalar_lea.vmem %s3, 96
        %v1019 = vld [vmem:[%s1018] sm:$0xff]
        %v1020 = vld [vmem:[%s1018 + $0x8] sm:$0xff]
        %v1021 = vld [vmem:[%s1018 + $0x10] sm:$0xff]
        %v1022 = vld [vmem:[%s1018 + $0x18] sm:$0xff]
        %s1023 = scalar_lea.vmem %s4, 96
        %v1024 = vld [vmem:[%s1023] sm:$0xff]
        %v1025 = vld [vmem:[%s1023 + $0x8] sm:$0xff]
        %v1026 = vld [vmem:[%s1023 + $0x10] sm:$0xff]
        %v1027 = vld [vmem:[%s1023 + $0x18] sm:$0xff]
        %v1029 = vsel %vm416, %v1024, 0
        %v1032 = vsel %vm416, %v1025, 0
        %v1035 = vsel %vm416, %v1026, 0
        %v1038 = vsel %vm416, %v1027, 0
        %1040 = vmatpush.msra.mxu0 0.0
        %1041 = vmatpush.msra.mxu0 0.0
        %1042 = vmatpush.msra.mxu0 0.0
        %1043 = vmatpush.msra.mxu0 0.0
        %1044 = vmatpush.msra.mxu0 0.0
        %1045 = vmatpush.msra.mxu0 0.0
        %1046 = vmatpush.msra.mxu0 0.0
        %1047 = vmatpush.msra.mxu0 0.0
        %1048 = vmatpush.msra.mxu0 0.0
        %1049 = vmatpush.msra.mxu0 0.0
        %1050 = vmatpush.msra.mxu0 0.0
        %1051 = vmatpush.msra.mxu0 0.0
        %1052 = vmatpush.msra.mxu0 0.0
        %1053 = vmatpush.msra.mxu0 0.0
        %1054 = vmatpush.msra.mxu0 %v994
        %1055 = vmatpush.msra.mxu0 %v993
        %1056 = vmatmul.f32.gmra.mxu0 %v1029
        %v1057 = vpop.f32.mrf.mxu0
        %v1058 = vadd.f32 0.0, %v1057
        %1059 = vmatmul.f32.gmra.mxu0 %v1032
        %v1060 = vpop.f32.mrf.mxu0
        %v1061 = vadd.f32 0.0, %v1060
        %1062 = vmatmul.f32.gmra.mxu0 %v1035
        %v1063 = vpop.f32.mrf.mxu0
        %v1064 = vadd.f32 0.0, %v1063
        %1065 = vmatmul.f32.gmra.mxu0 %v1038
        %v1066 = vpop.f32.mrf.mxu0
        %v1067 = vadd.f32 0.0, %v1066
        %1068 = vdwg.mxu0
        %v1070 = vsel %vm416, %v1019, 0
        %v1073 = vsel %vm416, %v1020, 0
        %v1076 = vsel %vm416, %v1021, 0
        %v1079 = vsel %vm416, %v1022, 0
        %1081 = vmatpush.msra.mxu0 0.0
        %1082 = vmatpush.msra.mxu0 0.0
        %1083 = vmatpush.msra.mxu0 0.0
        %1084 = vmatpush.msra.mxu0 0.0
        %1085 = vmatpush.msra.mxu0 0.0
        %1086 = vmatpush.msra.mxu0 0.0
        %1087 = vmatpush.msra.mxu0 0.0
        %1088 = vmatpush.msra.mxu0 0.0
        %1089 = vmatpush.msra.mxu0 0.0
        %1090 = vmatpush.msra.mxu0 0.0
        %1091 = vmatpush.msra.mxu0 0.0
        %1092 = vmatpush.msra.mxu0 0.0
        %1093 = vmatpush.msra.mxu0 0.0
        %1094 = vmatpush.msra.mxu0 0.0
        %1095 = vmatpush.msra.mxu0 %v1017
        %1096 = vmatpush.msra.mxu0 %v1016
        %1097 = vmatmul.f32.gmra.mxu0 %v1070
        %v1098 = vpop.f32.mrf.mxu0
        %v1099 = vadd.f32 %v1058, %v1098
        %1100 = vmatmul.f32.gmra.mxu0 %v1073
        %v1101 = vpop.f32.mrf.mxu0
        %v1102 = vadd.f32 %v1061, %v1101
        %1103 = vmatmul.f32.gmra.mxu0 %v1076
        %v1104 = vpop.f32.mrf.mxu0
        %v1105 = vadd.f32 %v1064, %v1104
        %1106 = vmatmul.f32.gmra.mxu0 %v1079
        %v1107 = vpop.f32.mrf.mxu0
        %v1108 = vadd.f32 %v1067, %v1107
        %1109 = vdwg.mxu0
        %s1110 = scalar_lea.vmem %s5, 96
        %v1111 = vld [vmem:[%s1110] sm:$0xff]
        %v1112 = vld [vmem:[%s1110 + $0x8] sm:$0xff]
        %v1113 = vld [vmem:[%s1110 + $0x10] sm:$0xff]
        %v1114 = vld [vmem:[%s1110 + $0x18] sm:$0xff]
        %1116 = vset.pattern.permute.xlu0 0
        %1117 = vperm.xlu0 %1116, %v1111
        %v1118 = vpop.permute.xlu0 %1117
        %1121 = vset.pattern.permute.xlu0 0
        %1122 = vperm.xlu0 %1121, %v1112
        %v1123 = vpop.permute.xlu0 %1122
        %1126 = vset.pattern.permute.xlu0 0
        %1127 = vperm.xlu0 %1126, %v1113
        %v1128 = vpop.permute.xlu0 %1127
        %1131 = vset.pattern.permute.xlu0 0
        %1132 = vperm.xlu0 %1131, %v1114
        %v1133 = vpop.permute.xlu0 %1132
        %v1135 = vadd.f32 %v1099, %v1118
        %v1136 = vadd.f32 %v1102, %v1123
        %v1137 = vadd.f32 %v1105, %v1128
        %v1138 = vadd.f32 %v1108, %v1133
        %v1139 = vtanh.pop %v1135
        %v1140 = vtanh.pop %v1136
        %v1141 = vmul.f32 %v1137, 0.5
        %v1142 = vmul.f32 %v1138, 0.5
        %v1143 = vtanh.pop %v1141
        %v1144 = vtanh.pop %v1142
        %v1145 = vmul.f32 %v1143, 0.5
        %v1146 = vmul.f32 %v1144, 0.5
        %v1147 = vadd.f32 %v1145, 0.5
        %v1148 = vadd.f32 %v1146, 0.5
        %v1149 = vmul.f32 %v1139, %v1147
        %v1150 = vmul.f32 %v1140, %v1148
        %s1151 = scalar_lea.vmem %s6, 48
        %v1152 = vld [vmem:[%s1151] sm:$0xff]
        %v1153 = vld [vmem:[%s1151 + $0x8] sm:$0xff]
        %v1155 = vsel %vm416, %v1152, 0
        %v1158 = vsel %vm416, %v1153, 0
        %1160 = vmatpush.msra.mxu0 0.0
        %1161 = vmatpush.msra.mxu0 0.0
        %1162 = vmatpush.msra.mxu0 0.0
        %1163 = vmatpush.msra.mxu0 0.0
        %1164 = vmatpush.msra.mxu0 0.0
        %1165 = vmatpush.msra.mxu0 0.0
        %1166 = vmatpush.msra.mxu0 0.0
        %1167 = vmatpush.msra.mxu0 0.0
        %1168 = vmatpush.msra.mxu0 0.0
        %1169 = vmatpush.msra.mxu0 0.0
        %1170 = vmatpush.msra.mxu0 0.0
        %1171 = vmatpush.msra.mxu0 0.0
        %1172 = vmatpush.msra.mxu0 0.0
        %1173 = vmatpush.msra.mxu0 0.0
        %1174 = vmatpush.msra.mxu0 %v1150
        %1175 = vmatpush.msra.mxu0 %v1149
        %1176 = vmatmul.f32.gmra.mxu0 %v1155
        %v1177 = vpop.f32.mrf.mxu0
        %v1178 = vadd.f32 0.0, %v1177
        %1179 = vmatmul.f32.gmra.mxu0 %v1158
        %v1180 = vpop.f32.mrf.mxu0
        %v1181 = vadd.f32 0.0, %v1180
        %1182 = vdwg.mxu0
        %v1183 = vadd.f32 %v993, %v1178
        %v1184 = vadd.f32 %v994, %v1181
        %s1185 = scalar_lea.vmem %s7, 48
        %v1186 = vld [vmem:[%s1185] sm:$0xff]
        %v1187 = vld [vmem:[%s1185 + $0x8] sm:$0xff]
        %1189 = vset.pattern.permute.xlu0 0
        %1190 = vperm.xlu0 %1189, %v1186
        %v1191 = vpop.permute.xlu0 %1190
        %1194 = vset.pattern.permute.xlu0 0
        %1195 = vperm.xlu0 %1194, %v1187
        %v1196 = vpop.permute.xlu0 %1195
        %v1198 = vadd.f32 %v1183, %v1191
        %v1199 = vadd.f32 %v1184, %v1196
        %s1200 = scalar_lea.vmem %s8, 48
        %v1201 = vld [vmem:[%s1200] sm:$0xff]
        %v1202 = vld [vmem:[%s1200 + $0x8] sm:$0xff]
        %1204 = vset.pattern.permute.xlu0 0
        %1205 = vperm.xlu0 %1204, %v1201
        %v1206 = vpop.permute.xlu0 %1205
        %1209 = vset.pattern.permute.xlu0 0
        %1210 = vperm.xlu0 %1209, %v1202
        %v1211 = vpop.permute.xlu0 %1210
        %v1213 = vmul.f32 %v1149, %v1206
        %v1214 = vmul.f32 %v1150, %v1211
        %v1215 = vadd.f32 %v1010, %v1213
        %v1216 = vadd.f32 %v1011, %v1214
        %1217 = vrot.lane.b32.xlu0 %v1198, 2
        %v1218 = vpop.permute.xlu0 %1217
        %1219 = vrot.lane.b32.xlu0 %v1199, 2
        %v1220 = vpop.permute.xlu0 %1219
        %v1221 = vsel %vm400, %v1218, 0.0
        %v1222 = vsel %vm400, %v1220, 0.0
        %s1223 = scalar_lea.vmem %s3, 128
        %v1224 = vld [vmem:[%s1223] sm:$0xff]
        %v1225 = vld [vmem:[%s1223 + $0x8] sm:$0xff]
        %v1226 = vld [vmem:[%s1223 + $0x10] sm:$0xff]
        %v1227 = vld [vmem:[%s1223 + $0x18] sm:$0xff]
        %s1228 = scalar_lea.vmem %s4, 128
        %v1229 = vld [vmem:[%s1228] sm:$0xff]
        %v1230 = vld [vmem:[%s1228 + $0x8] sm:$0xff]
        %v1231 = vld [vmem:[%s1228 + $0x10] sm:$0xff]
        %v1232 = vld [vmem:[%s1228 + $0x18] sm:$0xff]
        %v1234 = vsel %vm416, %v1229, 0
        %v1237 = vsel %vm416, %v1230, 0
        %v1240 = vsel %vm416, %v1231, 0
        %v1243 = vsel %vm416, %v1232, 0
        %1245 = vmatpush.msra.mxu0 0.0
        %1246 = vmatpush.msra.mxu0 0.0
        %1247 = vmatpush.msra.mxu0 0.0
        %1248 = vmatpush.msra.mxu0 0.0
        %1249 = vmatpush.msra.mxu0 0.0
        %1250 = vmatpush.msra.mxu0 0.0
        %1251 = vmatpush.msra.mxu0 0.0
        %1252 = vmatpush.msra.mxu0 0.0
        %1253 = vmatpush.msra.mxu0 0.0
        %1254 = vmatpush.msra.mxu0 0.0
        %1255 = vmatpush.msra.mxu0 0.0
        %1256 = vmatpush.msra.mxu0 0.0
        %1257 = vmatpush.msra.mxu0 0.0
        %1258 = vmatpush.msra.mxu0 0.0
        %1259 = vmatpush.msra.mxu0 %v1199
        %1260 = vmatpush.msra.mxu0 %v1198
        %1261 = vmatmul.f32.gmra.mxu0 %v1234
        %v1262 = vpop.f32.mrf.mxu0
        %v1263 = vadd.f32 0.0, %v1262
        %1264 = vmatmul.f32.gmra.mxu0 %v1237
        %v1265 = vpop.f32.mrf.mxu0
        %v1266 = vadd.f32 0.0, %v1265
        %1267 = vmatmul.f32.gmra.mxu0 %v1240
        %v1268 = vpop.f32.mrf.mxu0
        %v1269 = vadd.f32 0.0, %v1268
        %1270 = vmatmul.f32.gmra.mxu0 %v1243
        %v1271 = vpop.f32.mrf.mxu0
        %v1272 = vadd.f32 0.0, %v1271
        %1273 = vdwg.mxu0
        %v1275 = vsel %vm416, %v1224, 0
        %v1278 = vsel %vm416, %v1225, 0
        %v1281 = vsel %vm416, %v1226, 0
        %v1284 = vsel %vm416, %v1227, 0
        %1286 = vmatpush.msra.mxu0 0.0
        %1287 = vmatpush.msra.mxu0 0.0
        %1288 = vmatpush.msra.mxu0 0.0
        %1289 = vmatpush.msra.mxu0 0.0
        %1290 = vmatpush.msra.mxu0 0.0
        %1291 = vmatpush.msra.mxu0 0.0
        %1292 = vmatpush.msra.mxu0 0.0
        %1293 = vmatpush.msra.mxu0 0.0
        %1294 = vmatpush.msra.mxu0 0.0
        %1295 = vmatpush.msra.mxu0 0.0
        %1296 = vmatpush.msra.mxu0 0.0
        %1297 = vmatpush.msra.mxu0 0.0
        %1298 = vmatpush.msra.mxu0 0.0
        %1299 = vmatpush.msra.mxu0 0.0
        %1300 = vmatpush.msra.mxu0 %v1222
        %1301 = vmatpush.msra.mxu0 %v1221
        %1302 = vmatmul.f32.gmra.mxu0 %v1275
        %v1303 = vpop.f32.mrf.mxu0
        %v1304 = vadd.f32 %v1263, %v1303
        %1305 = vmatmul.f32.gmra.mxu0 %v1278
        %v1306 = vpop.f32.mrf.mxu0
        %v1307 = vadd.f32 %v1266, %v1306
        %1308 = vmatmul.f32.gmra.mxu0 %v1281
        %v1309 = vpop.f32.mrf.mxu0
        %v1310 = vadd.f32 %v1269, %v1309
        %1311 = vmatmul.f32.gmra.mxu0 %v1284
        %v1312 = vpop.f32.mrf.mxu0
        %v1313 = vadd.f32 %v1272, %v1312
        %1314 = vdwg.mxu0
        %s1315 = scalar_lea.vmem %s5, 128
        %v1316 = vld [vmem:[%s1315] sm:$0xff]
        %v1317 = vld [vmem:[%s1315 + $0x8] sm:$0xff]
        %v1318 = vld [vmem:[%s1315 + $0x10] sm:$0xff]
        %v1319 = vld [vmem:[%s1315 + $0x18] sm:$0xff]
        %1321 = vset.pattern.permute.xlu0 0
        %1322 = vperm.xlu0 %1321, %v1316
        %v1323 = vpop.permute.xlu0 %1322
        %1326 = vset.pattern.permute.xlu0 0
        %1327 = vperm.xlu0 %1326, %v1317
        %v1328 = vpop.permute.xlu0 %1327
        %1331 = vset.pattern.permute.xlu0 0
        %1332 = vperm.xlu0 %1331, %v1318
        %v1333 = vpop.permute.xlu0 %1332
        %1336 = vset.pattern.permute.xlu0 0
        %1337 = vperm.xlu0 %1336, %v1319
        %v1338 = vpop.permute.xlu0 %1337
        %v1340 = vadd.f32 %v1304, %v1323
        %v1341 = vadd.f32 %v1307, %v1328
        %v1342 = vadd.f32 %v1310, %v1333
        %v1343 = vadd.f32 %v1313, %v1338
        %v1344 = vtanh.pop %v1340
        %v1345 = vtanh.pop %v1341
        %v1346 = vmul.f32 %v1342, 0.5
        %v1347 = vmul.f32 %v1343, 0.5
        %v1348 = vtanh.pop %v1346
        %v1349 = vtanh.pop %v1347
        %v1350 = vmul.f32 %v1348, 0.5
        %v1351 = vmul.f32 %v1349, 0.5
        %v1352 = vadd.f32 %v1350, 0.5
        %v1353 = vadd.f32 %v1351, 0.5
        %v1354 = vmul.f32 %v1344, %v1352
        %v1355 = vmul.f32 %v1345, %v1353
        %s1356 = scalar_lea.vmem %s6, 64
        %v1357 = vld [vmem:[%s1356] sm:$0xff]
        %v1358 = vld [vmem:[%s1356 + $0x8] sm:$0xff]
        %v1360 = vsel %vm416, %v1357, 0
        %v1363 = vsel %vm416, %v1358, 0
        %1365 = vmatpush.msra.mxu0 0.0
        %1366 = vmatpush.msra.mxu0 0.0
        %1367 = vmatpush.msra.mxu0 0.0
        %1368 = vmatpush.msra.mxu0 0.0
        %1369 = vmatpush.msra.mxu0 0.0
        %1370 = vmatpush.msra.mxu0 0.0
        %1371 = vmatpush.msra.mxu0 0.0
        %1372 = vmatpush.msra.mxu0 0.0
        %1373 = vmatpush.msra.mxu0 0.0
        %1374 = vmatpush.msra.mxu0 0.0
        %1375 = vmatpush.msra.mxu0 0.0
        %1376 = vmatpush.msra.mxu0 0.0
        %1377 = vmatpush.msra.mxu0 0.0
        %1378 = vmatpush.msra.mxu0 0.0
        %1379 = vmatpush.msra.mxu0 %v1355
        %1380 = vmatpush.msra.mxu0 %v1354
        %1381 = vmatmul.f32.gmra.mxu0 %v1360
        %v1382 = vpop.f32.mrf.mxu0
        %v1383 = vadd.f32 0.0, %v1382
        %1384 = vmatmul.f32.gmra.mxu0 %v1363
        %v1385 = vpop.f32.mrf.mxu0
        %v1386 = vadd.f32 0.0, %v1385
        %1387 = vdwg.mxu0
        %v1388 = vadd.f32 %v1198, %v1383
        %v1389 = vadd.f32 %v1199, %v1386
        %s1390 = scalar_lea.vmem %s7, 64
        %v1391 = vld [vmem:[%s1390] sm:$0xff]
        %v1392 = vld [vmem:[%s1390 + $0x8] sm:$0xff]
        %1394 = vset.pattern.permute.xlu0 0
        %1395 = vperm.xlu0 %1394, %v1391
        %v1396 = vpop.permute.xlu0 %1395
        %1399 = vset.pattern.permute.xlu0 0
        %1400 = vperm.xlu0 %1399, %v1392
        %v1401 = vpop.permute.xlu0 %1400
        %v1403 = vadd.f32 %v1388, %v1396
        %v1404 = vadd.f32 %v1389, %v1401
        %s1405 = scalar_lea.vmem %s8, 64
        %v1406 = vld [vmem:[%s1405] sm:$0xff]
        %v1407 = vld [vmem:[%s1405 + $0x8] sm:$0xff]
        %1409 = vset.pattern.permute.xlu0 0
        %1410 = vperm.xlu0 %1409, %v1406
        %v1411 = vpop.permute.xlu0 %1410
        %1414 = vset.pattern.permute.xlu0 0
        %1415 = vperm.xlu0 %1414, %v1407
        %v1416 = vpop.permute.xlu0 %1415
        %v1418 = vmul.f32 %v1354, %v1411
        %v1419 = vmul.f32 %v1355, %v1416
        %v1420 = vadd.f32 %v1215, %v1418
        %v1421 = vadd.f32 %v1216, %v1419
        %1422 = vrot.lane.b32.xlu0 %v1403, 4
        %v1423 = vpop.permute.xlu0 %1422
        %1424 = vrot.lane.b32.xlu0 %v1404, 4
        %v1425 = vpop.permute.xlu0 %1424
        %v1426 = vsel %vm401, %v1423, 0.0
        %v1427 = vsel %vm401, %v1425, 0.0
        %s1428 = scalar_lea.vmem %s3, 160
        %v1429 = vld [vmem:[%s1428] sm:$0xff]
        %v1430 = vld [vmem:[%s1428 + $0x8] sm:$0xff]
        %v1431 = vld [vmem:[%s1428 + $0x10] sm:$0xff]
        %v1432 = vld [vmem:[%s1428 + $0x18] sm:$0xff]
        %s1433 = scalar_lea.vmem %s4, 160
        %v1434 = vld [vmem:[%s1433] sm:$0xff]
        %v1435 = vld [vmem:[%s1433 + $0x8] sm:$0xff]
        %v1436 = vld [vmem:[%s1433 + $0x10] sm:$0xff]
        %v1437 = vld [vmem:[%s1433 + $0x18] sm:$0xff]
        %v1439 = vsel %vm416, %v1434, 0
        %v1442 = vsel %vm416, %v1435, 0
        %v1445 = vsel %vm416, %v1436, 0
        %v1448 = vsel %vm416, %v1437, 0
        %1450 = vmatpush.msra.mxu0 0.0
        %1451 = vmatpush.msra.mxu0 0.0
        %1452 = vmatpush.msra.mxu0 0.0
        %1453 = vmatpush.msra.mxu0 0.0
        %1454 = vmatpush.msra.mxu0 0.0
        %1455 = vmatpush.msra.mxu0 0.0
        %1456 = vmatpush.msra.mxu0 0.0
        %1457 = vmatpush.msra.mxu0 0.0
        %1458 = vmatpush.msra.mxu0 0.0
        %1459 = vmatpush.msra.mxu0 0.0
        %1460 = vmatpush.msra.mxu0 0.0
        %1461 = vmatpush.msra.mxu0 0.0
        %1462 = vmatpush.msra.mxu0 0.0
        %1463 = vmatpush.msra.mxu0 0.0
        %1464 = vmatpush.msra.mxu0 %v1404
        %1465 = vmatpush.msra.mxu0 %v1403
        %1466 = vmatmul.f32.gmra.mxu0 %v1439
        %v1467 = vpop.f32.mrf.mxu0
        %v1468 = vadd.f32 0.0, %v1467
        %1469 = vmatmul.f32.gmra.mxu0 %v1442
        %v1470 = vpop.f32.mrf.mxu0
        %v1471 = vadd.f32 0.0, %v1470
        %1472 = vmatmul.f32.gmra.mxu0 %v1445
        %v1473 = vpop.f32.mrf.mxu0
        %v1474 = vadd.f32 0.0, %v1473
        %1475 = vmatmul.f32.gmra.mxu0 %v1448
        %v1476 = vpop.f32.mrf.mxu0
        %v1477 = vadd.f32 0.0, %v1476
        %1478 = vdwg.mxu0
        %v1480 = vsel %vm416, %v1429, 0
        %v1483 = vsel %vm416, %v1430, 0
        %v1486 = vsel %vm416, %v1431, 0
        %v1489 = vsel %vm416, %v1432, 0
        %1491 = vmatpush.msra.mxu0 0.0
        %1492 = vmatpush.msra.mxu0 0.0
        %1493 = vmatpush.msra.mxu0 0.0
        %1494 = vmatpush.msra.mxu0 0.0
        %1495 = vmatpush.msra.mxu0 0.0
        %1496 = vmatpush.msra.mxu0 0.0
        %1497 = vmatpush.msra.mxu0 0.0
        %1498 = vmatpush.msra.mxu0 0.0
        %1499 = vmatpush.msra.mxu0 0.0
        %1500 = vmatpush.msra.mxu0 0.0
        %1501 = vmatpush.msra.mxu0 0.0
        %1502 = vmatpush.msra.mxu0 0.0
        %1503 = vmatpush.msra.mxu0 0.0
        %1504 = vmatpush.msra.mxu0 0.0
        %1505 = vmatpush.msra.mxu0 %v1427
        %1506 = vmatpush.msra.mxu0 %v1426
        %1507 = vmatmul.f32.gmra.mxu0 %v1480
        %v1508 = vpop.f32.mrf.mxu0
        %v1509 = vadd.f32 %v1468, %v1508
        %1510 = vmatmul.f32.gmra.mxu0 %v1483
        %v1511 = vpop.f32.mrf.mxu0
        %v1512 = vadd.f32 %v1471, %v1511
        %1513 = vmatmul.f32.gmra.mxu0 %v1486
        %v1514 = vpop.f32.mrf.mxu0
        %v1515 = vadd.f32 %v1474, %v1514
        %1516 = vmatmul.f32.gmra.mxu0 %v1489
        %v1517 = vpop.f32.mrf.mxu0
        %v1518 = vadd.f32 %v1477, %v1517
        %1519 = vdwg.mxu0
        %s1520 = scalar_lea.vmem %s5, 160
        %v1521 = vld [vmem:[%s1520] sm:$0xff]
        %v1522 = vld [vmem:[%s1520 + $0x8] sm:$0xff]
        %v1523 = vld [vmem:[%s1520 + $0x10] sm:$0xff]
        %v1524 = vld [vmem:[%s1520 + $0x18] sm:$0xff]
        %1526 = vset.pattern.permute.xlu0 0
        %1527 = vperm.xlu0 %1526, %v1521
        %v1528 = vpop.permute.xlu0 %1527
        %1531 = vset.pattern.permute.xlu0 0
        %1532 = vperm.xlu0 %1531, %v1522
        %v1533 = vpop.permute.xlu0 %1532
        %1536 = vset.pattern.permute.xlu0 0
        %1537 = vperm.xlu0 %1536, %v1523
        %v1538 = vpop.permute.xlu0 %1537
        %1541 = vset.pattern.permute.xlu0 0
        %1542 = vperm.xlu0 %1541, %v1524
        %v1543 = vpop.permute.xlu0 %1542
        %v1545 = vadd.f32 %v1509, %v1528
        %v1546 = vadd.f32 %v1512, %v1533
        %v1547 = vadd.f32 %v1515, %v1538
        %v1548 = vadd.f32 %v1518, %v1543
        %v1549 = vtanh.pop %v1545
        %v1550 = vtanh.pop %v1546
        %v1551 = vmul.f32 %v1547, 0.5
        %v1552 = vmul.f32 %v1548, 0.5
        %v1553 = vtanh.pop %v1551
        %v1554 = vtanh.pop %v1552
        %v1555 = vmul.f32 %v1553, 0.5
        %v1556 = vmul.f32 %v1554, 0.5
        %v1557 = vadd.f32 %v1555, 0.5
        %v1558 = vadd.f32 %v1556, 0.5
        %v1559 = vmul.f32 %v1549, %v1557
        %v1560 = vmul.f32 %v1550, %v1558
        %s1561 = scalar_lea.vmem %s8, 80
        %v1562 = vld [vmem:[%s1561] sm:$0xff]
        %v1563 = vld [vmem:[%s1561 + $0x8] sm:$0xff]
        %1565 = vset.pattern.permute.xlu0 0
        %1566 = vperm.xlu0 %1565, %v1562
        %v1567 = vpop.permute.xlu0 %1566
        %1570 = vset.pattern.permute.xlu0 0
        %1571 = vperm.xlu0 %1570, %v1563
        %v1572 = vpop.permute.xlu0 %1571
        %v1574 = vmul.f32 %v1559, %v1567
        %v1575 = vmul.f32 %v1560, %v1572
        %v1576 = vadd.f32 %v1420, %v1574
        %v1577 = vadd.f32 %v1421, %v1575
        %v1578 = vadd.f32 %v1576, %v1577
        %v1579 = vrot.slane %v1578, 4
        %v1580 = vadd.f32 %v1578, %v1579
        %v1581 = vrot.slane %v1580, 2
        %v1582 = vadd.f32 %v1580, %v1581
        %v1583 = vrot.slane %v1582, 1
        %v1584 = vadd.f32 %v1582, %v1583
        %v1585 = vld [vmem:[#allocation2] sm:$0x1]
        %1587 = vset.pattern.permute.xlu0 0
        %1588 = vperm.xlu0 %1587, %v1585
        %v1589 = vpop.permute.xlu0 %1588
        %v1591 = vperm.slane %v1589, 0
        %v1592 = vadd.f32 %v1584, %v1591
        %1593 = vst [vmem:[%s349] sm:$0x1] %v1592
        %s1594 = sand.u32 %s249, 1
        %s1595 = scalar_lea.sflag [#allocation4], %s1594
        %s1596 = sand.u32 %s249, 1
        %s1597 = scalar_lea.vmem [#allocation3], %s1596
        // Predicated region
        $region61: #{tpu_custom_call.1} parent=59 // pred_check
          %p1598 = pneg %p259
        $region62: #{tpu_custom_call.1} parent=59 // pred_check_branch
          %1600 = sbr.rel (%p1598) target = $region64
        $region63: #{tpu_custom_call.1} parent=59 // pred_region
          %1602 = vsyncadd %s1595, 0
          %s1603 = scalar_lea.hbm %s10, %s26
          %s1605 = sshll.u32 %s1597, 4
          %s1606 = int_to_ptr.vmem [resolvable:$true] %s1605
          %s1607 = sshll.u32 %s1603, 4
          %s1608 = int_to_ptr.hbm [resolvable:$true] %s1607
          %1610 = dma.vmem_to_hbm [thread:$0]  %s1606, 16, %s1608, %s1595
        $region64: #{tpu_custom_call.1} parent=59 // pred_fallthru
          _
      $region60: #{tpu_custom_call.1} parent=5 // pred_fallthru
        _
      %p1611 = scmp.le.s32.totalorder 2, %s21
      // Predicated region
      $region65: #{tpu_custom_call.1} parent=5 // pred_check
        %p1612 = pneg %p1611
      $region66: #{tpu_custom_call.1} parent=5 // pred_check_branch
        %1614 = sbr.rel (%p1612) target = $region68
      $region67: #{tpu_custom_call.1} parent=5 // pred_region
        %s1615 = ssub.s32 %s21, 2
        // Predicated region
        $region69: #{tpu_custom_call.1} parent=67 // pred_check
          %p1616 = pneg %p265
        $region70: #{tpu_custom_call.1} parent=67 // pred_check_branch
          %1618 = sbr.rel (%p1616) target = $region72
        $region71: #{tpu_custom_call.1} parent=67 // pred_region
          %s1619 = sand.u32 %s250, 1
          %s1620 = scalar_lea.sflag [#allocation4], %s1619
          %s1621 = sand.u32 %s250, 1
          %s1622 = scalar_lea.vmem [#allocation3], %s1621
          %1624 = dma.done %s1620, 16
        $region72: #{tpu_custom_call.1} parent=67 // pred_fallthru
          _
      $region68: #{tpu_custom_call.1} parent=5 // pred_fallthru
        _
    $region6: #{tpu_custom_call.1} parent=1 // loop_footer
      %s25 = sadd.s32 1, %s21
    $region7: #{tpu_custom_call.1} parent=1 // loop_footer_branch
      %20 = sbr.rel target = $region3
    $region8: #{tpu_custom_call.1} parent=1 // loop_exit
      _
    %1625 = vsyncpa [#allocation4], 1
    %s1626 = scalar_lea.sflag [#allocation4], 1
    %1627 = vsyncpa %s1626, 1

</llo_original>
